<compile_context>
chip_gen: v7x
topology: tpu7x:2x2x1
jax: 0.10.0
libtpu: 0.0.40
codegen_flags: <defaults>
</compile_context>

<pallas_src>
import jax
import jax.numpy as jnp
from jax.experimental import pallas as pl
from jax.experimental.pallas import tpu as pltpu


def _conv_out(size, stride, pad):
    """Output spatial size of a kernel-size-1 conv."""
    return (size + 2 * pad - 1) // stride + 1


def _interior(out_len, in_len, stride, pad):
    """(first, count) of output positions whose 1x1 tap lands inside the input."""
    lo = (pad + stride - 1) // stride                     # stride*o - pad >= 0
    hi = min(out_len - 1, (in_len - 1 + pad) // stride)   # stride*o - pad <= in-1
    return lo, max(hi - lo + 1, 0)


def _conv1x1_stage(src_ref, w_ref, b_ref, samp_ref, dst_ref, bounce_ref,
                   *, stride, pad, slope):
    """One 1x1 conv (+bias, leaky-relu-style activation) in NCHW, fully on-chip.

    src_ref    : VMEM [N, Cin, Hi, Wi]   stage input feature map
    w_ref      : SMEM [Cout*Cin]         row-major [Cout, Cin] weights (scalars)
    b_ref      : SMEM [Cout]
    samp_ref   : VMEM [N, Cin, Ho, Wo]   scratch: zero-padded, stride-sampled input
    dst_ref    : VMEM [N, Cout, Ho, Wo]  stage output
    bounce_ref : VMEM [N, Cin, Wi, nr]   scratch for the W-stride pass (stride>1 only)
    """
    n, cin, h_in, w_in = src_ref.shape
    _, cout, h_out, w_out = dst_ref.shape

    r0, nr = _interior(h_out, h_in, stride, pad)
    c0, nc = _interior(w_out, w_in, stride, pad)
    ih0 = stride * r0 - pad
    iw0 = stride * c0 - pad

    # ---- 1) zero-padded, stride-sampled input frame -------------------------
    # Border pixels stay 0, so the 1x1 conv evaluates to exactly `bias` there —
    # no masks, no fill-then-overwrite of the destination.
    samp_ref[...] = jnp.zeros_like(samp_ref)
    if nr > 0 and nc > 0:
        if stride == 1:
            interior = src_ref[:, :, pl.ds(ih0, nr), pl.ds(iw0, nc)]
        else:
            # H stride: one strided sublane read from the ref.
            rows = src_ref[:, :, pl.ds(ih0, nr, stride), :]       # [N,Cin,nr,Wi]
            # W stride: transpose (XLU), bounce through VMEM, strided sublane
            # read again, transpose back.  Gather-free and concat-free.
            bounce_ref[...] = jnp.swapaxes(rows, 2, 3)            # [N,Cin,Wi,nr]
            cols_t = bounce_ref[:, :, pl.ds(iw0, nc, stride), :]  # [N,Cin,nc,nr]
            interior = jnp.swapaxes(cols_t, 2, 3)                 # [N,Cin,nr,nc]
        samp_ref[:, :, r0:r0 + nr, c0:c0 + nc] = interior

    # ---- 2) channel mix + bias + activation (f32 VPU FMAs, scalars hoisted) --
    wv = [w_ref[i] for i in range(cout * cin)]        # hoisted SMEM scalar reads
    bv = [b_ref[i] for i in range(cout)]
    xs = [samp_ref[:, ci] for ci in range(cin)]       # hoisted per-channel planes
    for co in range(cout):
        acc = xs[0] * wv[co * cin]
        for ci in range(1, cin):
            acc = acc + xs[ci] * wv[co * cin + ci]
        acc = acc + bv[co]
        # one unmasked full-plane store per output channel (leading-dim index)
        dst_ref[:, co] = jnp.where(acc > 0, acc, acc * slope)


def fused_model_kernel(x_ref, w1_ref, b1_ref, w2_ref, b2_ref, w3_ref, b3_ref,
                       o_ref,
                       bnc1_ref, samp1_ref, v4_ref,
                       samp2_ref, v8_ref,
                       bnc3_ref, samp3_ref):
    # conv1: 3->1, stride 2, pad 1, leaky_relu(0.1)     -> v4 (VMEM resident)
    _conv1x1_stage(x_ref, w1_ref, b1_ref, samp1_ref, v4_ref, bnc1_ref,
                   stride=2, pad=1, slope=0.1)
    # conv2: 1->5, stride 1, pad 1, leaky_relu(0.1)     -> v8 (VMEM resident)
    _conv1x1_stage(v4_ref, w2_ref, b2_ref, samp2_ref, v8_ref, None,
                   stride=1, pad=1, slope=0.1)
    # conv3: 5->3, stride 2, pad 1, then where(v9>0, v9, v9*-0.1)
    # TODO(synk): the original forward builds the negative branch from
    # v5 * -0.1 (shape [N,5,11,11]) which cannot broadcast against v9
    # ([N,3,7,7]); the PyTorch module raises at runtime.  We implement the
    # only runnable interpretation: where(v9 > 0, v9, v9 * -0.1).
    _conv1x1_stage(v8_ref, w3_ref, b3_ref, samp3_ref, o_ref, bnc3_ref,
                   stride=2, pad=1, slope=-0.1)


@jax.jit
def model_forward(x_nchw, params):
    (w1, b1), (w2, b2), (w3, b3) = params
    n, cin, h0, w0 = x_nchw.shape

    h1, wd1 = _conv_out(h0, 2, 1), _conv_out(w0, 2, 1)
    h2, wd2 = _conv_out(h1, 1, 1), _conv_out(wd1, 1, 1)
    h3, wd3 = _conv_out(h2, 2, 1), _conv_out(wd2, 2, 1)

    _, nr1 = _interior(h1, h0, 2, 1)    # interior row count of conv1 output
    _, nr3 = _interior(h3, h2, 2, 1)    # interior row count of conv3 output

    vmem = pl.BlockSpec(memory_space=pltpu.MemorySpace.VMEM)
    smem = pl.BlockSpec(memory_space=pltpu.MemorySpace.SMEM)

    return pl.pallas_call(
        fused_model_kernel,
        out_shape=jax.ShapeDtypeStruct((n, 3, h3, wd3), jnp.float32),
        in_specs=[vmem, smem, smem, smem, smem, smem, smem],
        out_specs=vmem,
        scratch_shapes=[
            pltpu.VMEM((n, cin, w0, max(nr1, 1)), jnp.float32),   # conv1 W-stride bounce
            pltpu.VMEM((n, cin, h1, wd1), jnp.float32),           # conv1 sampled frame
            pltpu.VMEM((n, 1, h1, wd1), jnp.float32),             # v4
            pltpu.VMEM((n, 1, h2, wd2), jnp.float32),             # conv2 sampled frame
            pltpu.VMEM((n, 5, h2, wd2), jnp.float32),             # v8
            pltpu.VMEM((n, 5, wd2, max(nr3, 1)), jnp.float32),    # conv3 W-stride bounce
            pltpu.VMEM((n, 5, h3, wd3), jnp.float32),             # conv3 sampled frame
        ],
    )(x_nchw,
      w1.reshape(-1), b1, w2.reshape(-1), b2, w3.reshape(-1), b3)


# ---------------------------- pure-JAX reference -----------------------------
def _ref_conv1x1(x_nchw, w, b, stride, pad):
    """Exact f32 reference 1x1 conv (elementwise ops only)."""
    xp = jnp.pad(x_nchw, ((0, 0), (0, 0), (pad, pad), (pad, pad)))
    xs = xp[:, :, ::stride, ::stride]                               # [N,Cin,Ho,Wo]
    y = jnp.sum(w[None, :, :, None, None] * xs[:, None, :, :, :], axis=2)
    return y + b[None, :, None, None]


def reference_forward(x, params):
    (w1, b1), (w2, b2), (w3, b3) = params
    v1 = _ref_conv1x1(x, w1, b1, 2, 1)
    v4 = jnp.where(v1 > 0, v1, v1 * 0.1)
    v5 = _ref_conv1x1(v4, w2, b2, 1, 1)
    v8 = jnp.where(v5 > 0, v5, v5 * 0.1)
    v9 = _ref_conv1x1(v8, w3, b3, 2, 1)
    return jnp.where(v9 > 0, v9, v9 * (-0.1))


def init_params(key):
    """PyTorch Conv2d-style init: U(-1/sqrt(fan_in), 1/sqrt(fan_in)); w is [Cout, Cin]."""
    def conv_init(k, cin, cout):
        kw, kb = jax.random.split(k)
        bound = 1.0 / (cin ** 0.5)
        w = jax.random.uniform(kw, (cout, cin), jnp.float32, -bound, bound)
        b = jax.random.uniform(kb, (cout,), jnp.float32, -bound, bound)
        return w, b

    k1, k2, k3 = jax.random.split(key, 3)
    return conv_init(k1, 3, 1), conv_init(k2, 1, 5), conv_init(k3, 5, 3)


if __name__ == "__main__":
    key = jax.random.PRNGKey(0)
    kx, kp = jax.random.split(key)
    x = jax.random.normal(kx, (2, 3, 16, 16), dtype=jnp.float32)   # NCHW
    params = init_params(kp)

    out = jax.block_until_ready(model_forward(x, params))
    assert out.shape == (2, 3, 7, 7), out.shape

    ref = jax.block_until_ready(reference_forward(x, params))
    max_err = float(jnp.max(jnp.abs(out - ref)))
    assert jnp.allclose(out, ref, atol=1e-5, rtol=1e-5), max_err

    print("KERNEL_OK")
</pallas_src>

<mosaic_0001>
module attributes {stable_mosaic.version = 11 : i64} {
  func.func @fused_model_kernel(%arg0: memref<2x3x16x16xf32, #tpu.memory_space<vmem>>, %arg1: memref<3xf32, #tpu.memory_space<smem>>, %arg2: memref<1xf32, #tpu.memory_space<smem>>, %arg3: memref<5xf32, #tpu.memory_space<smem>>, %arg4: memref<5xf32, #tpu.memory_space<smem>>, %arg5: memref<15xf32, #tpu.memory_space<smem>>, %arg6: memref<3xf32, #tpu.memory_space<smem>>, %arg7: memref<2x3x7x7xf32, #tpu.memory_space<vmem>>, %arg8: memref<2x3x16x8xf32, #tpu.memory_space<vmem>>, %arg9: memref<2x3x9x9xf32, #tpu.memory_space<vmem>>, %arg10: memref<2x1x9x9xf32, #tpu.memory_space<vmem>>, %arg11: memref<2x1x11x11xf32, #tpu.memory_space<vmem>>, %arg12: memref<2x5x11x11xf32, #tpu.memory_space<vmem>>, %arg13: memref<2x5x11x5xf32, #tpu.memory_space<vmem>>, %arg14: memref<2x5x7x7xf32, #tpu.memory_space<vmem>>) attributes {dimension_semantics = [], scalar_prefetch = 0 : i64, scratch_operands = 7 : i64, tpu.core_type = #tpu.core_type<tc>} {
    %cst = arith.constant 0.000000e+00 : f32
    %0 = vector.broadcast %cst : f32 to vector<2x3x9x9xf32>
    %c0 = arith.constant 0 : index
    %c0_0 = arith.constant 0 : index
    %c0_1 = arith.constant 0 : index
    %c0_2 = arith.constant 0 : index
    %1 = vector.load %arg9[%c0, %c0_0, %c0_1, %c0_2] : memref<2x3x9x9xf32, #tpu.memory_space<vmem>>, vector<2x3x9x9xf32>
    tpu.vector_store %arg9[%c0, %c0_0, %c0_1, %c0_2], %0 {strides = array<i32>} : memref<2x3x9x9xf32, #tpu.memory_space<vmem>>, vector<2x3x9x9xf32>,
    %c0_3 = arith.constant 0 : index
    %c0_4 = arith.constant 0 : index
    %c1 = arith.constant 1 : index
    %c0_5 = arith.constant 0 : index
    %2 = tpu.strided_load %arg0[%c0_3, %c0_4, %c1, %c0_5] {strides = array<i32: 1, 1, 2, 1>} : memref<2x3x16x16xf32, #tpu.memory_space<vmem>>, vector<2x3x8x16xf32>
    %3 = tpu.transpose %2, [0, 1, 3, 2] : vector<2x3x8x16xf32> -> vector<2x3x16x8xf32>
    %c0_6 = arith.constant 0 : index
    %c0_7 = arith.constant 0 : index
    %c0_8 = arith.constant 0 : index
    %c0_9 = arith.constant 0 : index
    %4 = vector.load %arg8[%c0_6, %c0_7, %c0_8, %c0_9] : memref<2x3x16x8xf32, #tpu.memory_space<vmem>>, vector<2x3x16x8xf32>
    tpu.vector_store %arg8[%c0_6, %c0_7, %c0_8, %c0_9], %3 {strides = array<i32>} : memref<2x3x16x8xf32, #tpu.memory_space<vmem>>, vector<2x3x16x8xf32>,
    %c0_10 = arith.constant 0 : index
    %c0_11 = arith.constant 0 : index
    %c1_12 = arith.constant 1 : index
    %c0_13 = arith.constant 0 : index
    %5 = tpu.strided_load %arg8[%c0_10, %c0_11, %c1_12, %c0_13] {strides = array<i32: 1, 1, 2, 1>} : memref<2x3x16x8xf32, #tpu.memory_space<vmem>>, vector<2x3x8x8xf32>
    %6 = tpu.transpose %5, [0, 1, 3, 2] : vector<2x3x8x8xf32> -> vector<2x3x8x8xf32>
    %c0_14 = arith.constant 0 : index
    %c0_15 = arith.constant 0 : index
    %c1_16 = arith.constant 1 : index
    %c1_17 = arith.constant 1 : index
    %7 = vector.load %arg9[%c0_14, %c0_15, %c1_16, %c1_17] : memref<2x3x9x9xf32, #tpu.memory_space<vmem>>, vector<2x3x8x8xf32>
    tpu.vector_store %arg9[%c0_14, %c0_15, %c1_16, %c1_17], %6 {strides = array<i32>} : memref<2x3x9x9xf32, #tpu.memory_space<vmem>>, vector<2x3x8x8xf32>,
    %c0_18 = arith.constant 0 : index
    %8 = memref.load %arg1[%c0_18] : memref<3xf32, #tpu.memory_space<smem>>
    %c1_19 = arith.constant 1 : index
    %9 = memref.load %arg1[%c1_19] : memref<3xf32, #tpu.memory_space<smem>>
    %c2 = arith.constant 2 : index
    %10 = memref.load %arg1[%c2] : memref<3xf32, #tpu.memory_space<smem>>
    %c0_20 = arith.constant 0 : index
    %11 = memref.load %arg2[%c0_20] : memref<1xf32, #tpu.memory_space<smem>>
    %c0_21 = arith.constant 0 : index
    %c0_22 = arith.constant 0 : index
    %c0_23 = arith.constant 0 : index
    %c0_24 = arith.constant 0 : index
    %12 = vector.load %arg9[%c0_21, %c0_22, %c0_23, %c0_24] : memref<2x3x9x9xf32, #tpu.memory_space<vmem>>, vector<2x1x9x9xf32>
    %13 = vector.shape_cast %12 : vector<2x1x9x9xf32> to vector<2x9x9xf32>
    %c0_25 = arith.constant 0 : index
    %c1_26 = arith.constant 1 : index
    %c0_27 = arith.constant 0 : index
    %c0_28 = arith.constant 0 : index
    %14 = vector.load %arg9[%c0_25, %c1_26, %c0_27, %c0_28] : memref<2x3x9x9xf32, #tpu.memory_space<vmem>>, vector<2x1x9x9xf32>
    %15 = vector.shape_cast %14 : vector<2x1x9x9xf32> to vector<2x9x9xf32>
    %c0_29 = arith.constant 0 : index
    %c2_30 = arith.constant 2 : index
    %c0_31 = arith.constant 0 : index
    %c0_32 = arith.constant 0 : index
    %16 = vector.load %arg9[%c0_29, %c2_30, %c0_31, %c0_32] : memref<2x3x9x9xf32, #tpu.memory_space<vmem>>, vector<2x1x9x9xf32>
    %17 = vector.shape_cast %16 : vector<2x1x9x9xf32> to vector<2x9x9xf32>
    %18 = vector.broadcast %8 : f32 to vector<2x9x9xf32>
    %19 = arith.mulf %13, %18 : vector<2x9x9xf32>
    %20 = vector.broadcast %9 : f32 to vector<2x9x9xf32>
    %21 = arith.mulf %15, %20 : vector<2x9x9xf32>
    %22 = arith.addf %19, %21 : vector<2x9x9xf32>
    %23 = vector.broadcast %10 : f32 to vector<2x9x9xf32>
    %24 = arith.mulf %17, %23 : vector<2x9x9xf32>
    %25 = arith.addf %22, %24 : vector<2x9x9xf32>
    %26 = vector.broadcast %11 : f32 to vector<2x9x9xf32>
    %27 = arith.addf %25, %26 : vector<2x9x9xf32>
    %cst_33 = arith.constant 0.000000e+00 : f32
    %28 = vector.broadcast %cst_33 : f32 to vector<2x9x9xf32>
    %29 = arith.cmpf ogt, %27, %28 : vector<2x9x9xf32>
    %cst_34 = arith.constant 1.000000e-01 : f32
    %30 = vector.broadcast %cst_34 : f32 to vector<2x9x9xf32>
    %31 = arith.mulf %27, %30 : vector<2x9x9xf32>
    %32 = arith.select %29, %27, %31 : vector<2x9x9xi1>, vector<2x9x9xf32>
    %c0_35 = arith.constant 0 : index
    %c0_36 = arith.constant 0 : index
    %c0_37 = arith.constant 0 : index
    %c0_38 = arith.constant 0 : index
    %33 = vector.load %arg10[%c0_35, %c0_36, %c0_37, %c0_38] : memref<2x1x9x9xf32, #tpu.memory_space<vmem>>, vector<2x1x9x9xf32>
    %34 = vector.shape_cast %33 : vector<2x1x9x9xf32> to vector<2x9x9xf32>
    %35 = vector.shape_cast %32 : vector<2x9x9xf32> to vector<2x1x9x9xf32>
    tpu.vector_store %arg10[%c0_35, %c0_36, %c0_37, %c0_38], %35 {strides = array<i32>} : memref<2x1x9x9xf32, #tpu.memory_space<vmem>>, vector<2x1x9x9xf32>,
    %cst_39 = arith.constant 0.000000e+00 : f32
    %36 = vector.broadcast %cst_39 : f32 to vector<2x1x11x11xf32>
    %c0_40 = arith.constant 0 : index
    %c0_41 = arith.constant 0 : index
    %c0_42 = arith.constant 0 : index
    %c0_43 = arith.constant 0 : index
    %37 = vector.load %arg11[%c0_40, %c0_41, %c0_42, %c0_43] : memref<2x1x11x11xf32, #tpu.memory_space<vmem>>, vector<2x1x11x11xf32>
    tpu.vector_store %arg11[%c0_40, %c0_41, %c0_42, %c0_43], %36 {strides = array<i32>} : memref<2x1x11x11xf32, #tpu.memory_space<vmem>>, vector<2x1x11x11xf32>,
    %c0_44 = arith.constant 0 : index
    %c0_45 = arith.constant 0 : index
    %c0_46 = arith.constant 0 : index
    %c0_47 = arith.constant 0 : index
    %38 = vector.load %arg10[%c0_44, %c0_45, %c0_46, %c0_47] : memref<2x1x9x9xf32, #tpu.memory_space<vmem>>, vector<2x1x9x9xf32>
    %c0_48 = arith.constant 0 : index
    %c0_49 = arith.constant 0 : index
    %c1_50 = arith.constant 1 : index
    %c1_51 = arith.constant 1 : index
    %39 = vector.load %arg11[%c0_48, %c0_49, %c1_50, %c1_51] : memref<2x1x11x11xf32, #tpu.memory_space<vmem>>, vector<2x1x9x9xf32>
    tpu.vector_store %arg11[%c0_48, %c0_49, %c1_50, %c1_51], %38 {strides = array<i32>} : memref<2x1x11x11xf32, #tpu.memory_space<vmem>>, vector<2x1x9x9xf32>,
    %c0_52 = arith.constant 0 : index
    %40 = memref.load %arg3[%c0_52] : memref<5xf32, #tpu.memory_space<smem>>
    %c1_53 = arith.constant 1 : index
    %41 = memref.load %arg3[%c1_53] : memref<5xf32, #tpu.memory_space<smem>>
    %c2_54 = arith.constant 2 : index
    %42 = memref.load %arg3[%c2_54] : memref<5xf32, #tpu.memory_space<smem>>
    %c3 = arith.constant 3 : index
    %43 = memref.load %arg3[%c3] : memref<5xf32, #tpu.memory_space<smem>>
    %c4 = arith.constant 4 : index
    %44 = memref.load %arg3[%c4] : memref<5xf32, #tpu.memory_space<smem>>
    %c0_55 = arith.constant 0 : index
    %45 = memref.load %arg4[%c0_55] : memref<5xf32, #tpu.memory_space<smem>>
    %c1_56 = arith.constant 1 : index
    %46 = memref.load %arg4[%c1_56] : memref<5xf32, #tpu.memory_space<smem>>
    %c2_57 = arith.constant 2 : index
    %47 = memref.load %arg4[%c2_57] : memref<5xf32, #tpu.memory_space<smem>>
    %c3_58 = arith.constant 3 : index
    %48 = memref.load %arg4[%c3_58] : memref<5xf32, #tpu.memory_space<smem>>
    %c4_59 = arith.constant 4 : index
    %49 = memref.load %arg4[%c4_59] : memref<5xf32, #tpu.memory_space<smem>>
    %c0_60 = arith.constant 0 : index
    %c0_61 = arith.constant 0 : index
    %c0_62 = arith.constant 0 : index
    %c0_63 = arith.constant 0 : index
    %50 = vector.load %arg11[%c0_60, %c0_61, %c0_62, %c0_63] : memref<2x1x11x11xf32, #tpu.memory_space<vmem>>, vector<2x1x11x11xf32>
    %51 = vector.shape_cast %50 : vector<2x1x11x11xf32> to vector<2x11x11xf32>
    %52 = vector.broadcast %40 : f32 to vector<2x11x11xf32>
    %53 = arith.mulf %51, %52 : vector<2x11x11xf32>
    %54 = vector.broadcast %45 : f32 to vector<2x11x11xf32>
    %55 = arith.addf %53, %54 : vector<2x11x11xf32>
    %cst_64 = arith.constant 0.000000e+00 : f32
    %56 = vector.broadcast %cst_64 : f32 to vector<2x11x11xf32>
    %57 = arith.cmpf ogt, %55, %56 : vector<2x11x11xf32>
    %cst_65 = arith.constant 1.000000e-01 : f32
    %58 = vector.broadcast %cst_65 : f32 to vector<2x11x11xf32>
    %59 = arith.mulf %55, %58 : vector<2x11x11xf32>
    %60 = arith.select %57, %55, %59 : vector<2x11x11xi1>, vector<2x11x11xf32>
    %c0_66 = arith.constant 0 : index
    %c0_67 = arith.constant 0 : index
    %c0_68 = arith.constant 0 : index
    %c0_69 = arith.constant 0 : index
    %61 = vector.load %arg12[%c0_66, %c0_67, %c0_68, %c0_69] : memref<2x5x11x11xf32, #tpu.memory_space<vmem>>, vector<2x1x11x11xf32>
    %62 = vector.shape_cast %61 : vector<2x1x11x11xf32> to vector<2x11x11xf32>
    %63 = vector.shape_cast %60 : vector<2x11x11xf32> to vector<2x1x11x11xf32>
    tpu.vector_store %arg12[%c0_66, %c0_67, %c0_68, %c0_69], %63 {strides = array<i32>} : memref<2x5x11x11xf32, #tpu.memory_space<vmem>>, vector<2x1x11x11xf32>,
    %64 = vector.broadcast %41 : f32 to vector<2x11x11xf32>
    %65 = arith.mulf %51, %64 : vector<2x11x11xf32>
    %66 = vector.broadcast %46 : f32 to vector<2x11x11xf32>
    %67 = arith.addf %65, %66 : vector<2x11x11xf32>
    %cst_70 = arith.constant 0.000000e+00 : f32
    %68 = vector.broadcast %cst_70 : f32 to vector<2x11x11xf32>
    %69 = arith.cmpf ogt, %67, %68 : vector<2x11x11xf32>
    %cst_71 = arith.constant 1.000000e-01 : f32
    %70 = vector.broadcast %cst_71 : f32 to vector<2x11x11xf32>
    %71 = arith.mulf %67, %70 : vector<2x11x11xf32>
    %72 = arith.select %69, %67, %71 : vector<2x11x11xi1>, vector<2x11x11xf32>
    %c0_72 = arith.constant 0 : index
    %c1_73 = arith.constant 1 : index
    %c0_74 = arith.constant 0 : index
    %c0_75 = arith.constant 0 : index
    %73 = vector.load %arg12[%c0_72, %c1_73, %c0_74, %c0_75] : memref<2x5x11x11xf32, #tpu.memory_space<vmem>>, vector<2x1x11x11xf32>
    %74 = vector.shape_cast %73 : vector<2x1x11x11xf32> to vector<2x11x11xf32>
    %75 = vector.shape_cast %72 : vector<2x11x11xf32> to vector<2x1x11x11xf32>
    tpu.vector_store %arg12[%c0_72, %c1_73, %c0_74, %c0_75], %75 {strides = array<i32>} : memref<2x5x11x11xf32, #tpu.memory_space<vmem>>, vector<2x1x11x11xf32>,
    %76 = vector.broadcast %42 : f32 to vector<2x11x11xf32>
    %77 = arith.mulf %51, %76 : vector<2x11x11xf32>
    %78 = vector.broadcast %47 : f32 to vector<2x11x11xf32>
    %79 = arith.addf %77, %78 : vector<2x11x11xf32>
    %cst_76 = arith.constant 0.000000e+00 : f32
    %80 = vector.broadcast %cst_76 : f32 to vector<2x11x11xf32>
    %81 = arith.cmpf ogt, %79, %80 : vector<2x11x11xf32>
    %cst_77 = arith.constant 1.000000e-01 : f32
    %82 = vector.broadcast %cst_77 : f32 to vector<2x11x11xf32>
    %83 = arith.mulf %79, %82 : vector<2x11x11xf32>
    %84 = arith.select %81, %79, %83 : vector<2x11x11xi1>, vector<2x11x11xf32>
    %c0_78 = arith.constant 0 : index
    %c2_79 = arith.constant 2 : index
    %c0_80 = arith.constant 0 : index
    %c0_81 = arith.constant 0 : index
    %85 = vector.load %arg12[%c0_78, %c2_79, %c0_80, %c0_81] : memref<2x5x11x11xf32, #tpu.memory_space<vmem>>, vector<2x1x11x11xf32>
    %86 = vector.shape_cast %85 : vector<2x1x11x11xf32> to vector<2x11x11xf32>
    %87 = vector.shape_cast %84 : vector<2x11x11xf32> to vector<2x1x11x11xf32>
    tpu.vector_store %arg12[%c0_78, %c2_79, %c0_80, %c0_81], %87 {strides = array<i32>} : memref<2x5x11x11xf32, #tpu.memory_space<vmem>>, vector<2x1x11x11xf32>,
    %88 = vector.broadcast %43 : f32 to vector<2x11x11xf32>
    %89 = arith.mulf %51, %88 : vector<2x11x11xf32>
    %90 = vector.broadcast %48 : f32 to vector<2x11x11xf32>
    %91 = arith.addf %89, %90 : vector<2x11x11xf32>
    %cst_82 = arith.constant 0.000000e+00 : f32
    %92 = vector.broadcast %cst_82 : f32 to vector<2x11x11xf32>
    %93 = arith.cmpf ogt, %91, %92 : vector<2x11x11xf32>
    %cst_83 = arith.constant 1.000000e-01 : f32
    %94 = vector.broadcast %cst_83 : f32 to vector<2x11x11xf32>
    %95 = arith.mulf %91, %94 : vector<2x11x11xf32>
    %96 = arith.select %93, %91, %95 : vector<2x11x11xi1>, vector<2x11x11xf32>
    %c0_84 = arith.constant 0 : index
    %c3_85 = arith.constant 3 : index
    %c0_86 = arith.constant 0 : index
    %c0_87 = arith.constant 0 : index
    %97 = vector.load %arg12[%c0_84, %c3_85, %c0_86, %c0_87] : memref<2x5x11x11xf32, #tpu.memory_space<vmem>>, vector<2x1x11x11xf32>
    %98 = vector.shape_cast %97 : vector<2x1x11x11xf32> to vector<2x11x11xf32>
    %99 = vector.shape_cast %96 : vector<2x11x11xf32> to vector<2x1x11x11xf32>
    tpu.vector_store %arg12[%c0_84, %c3_85, %c0_86, %c0_87], %99 {strides = array<i32>} : memref<2x5x11x11xf32, #tpu.memory_space<vmem>>, vector<2x1x11x11xf32>,
    %100 = vector.broadcast %44 : f32 to vector<2x11x11xf32>
    %101 = arith.mulf %51, %100 : vector<2x11x11xf32>
    %102 = vector.broadcast %49 : f32 to vector<2x11x11xf32>
    %103 = arith.addf %101, %102 : vector<2x11x11xf32>
    %cst_88 = arith.constant 0.000000e+00 : f32
    %104 = vector.broadcast %cst_88 : f32 to vector<2x11x11xf32>
    %105 = arith.cmpf ogt, %103, %104 : vector<2x11x11xf32>
    %cst_89 = arith.constant 1.000000e-01 : f32
    %106 = vector.broadcast %cst_89 : f32 to vector<2x11x11xf32>
    %107 = arith.mulf %103, %106 : vector<2x11x11xf32>
    %108 = arith.select %105, %103, %107 : vector<2x11x11xi1>, vector<2x11x11xf32>
    %c0_90 = arith.constant 0 : index
    %c4_91 = arith.constant 4 : index
    %c0_92 = arith.constant 0 : index
    %c0_93 = arith.constant 0 : index
    %109 = vector.load %arg12[%c0_90, %c4_91, %c0_92, %c0_93] : memref<2x5x11x11xf32, #tpu.memory_space<vmem>>, vector<2x1x11x11xf32>
    %110 = vector.shape_cast %109 : vector<2x1x11x11xf32> to vector<2x11x11xf32>
    %111 = vector.shape_cast %108 : vector<2x11x11xf32> to vector<2x1x11x11xf32>
    tpu.vector_store %arg12[%c0_90, %c4_91, %c0_92, %c0_93], %111 {strides = array<i32>} : memref<2x5x11x11xf32, #tpu.memory_space<vmem>>, vector<2x1x11x11xf32>,
    %cst_94 = arith.constant 0.000000e+00 : f32
    %112 = vector.broadcast %cst_94 : f32 to vector<2x5x7x7xf32>
    %c0_95 = arith.constant 0 : index
    %c0_96 = arith.constant 0 : index
    %c0_97 = arith.constant 0 : index
    %c0_98 = arith.constant 0 : index
    %113 = vector.load %arg14[%c0_95, %c0_96, %c0_97, %c0_98] : memref<2x5x7x7xf32, #tpu.memory_space<vmem>>, vector<2x5x7x7xf32>
    tpu.vector_store %arg14[%c0_95, %c0_96, %c0_97, %c0_98], %112 {strides = array<i32>} : memref<2x5x7x7xf32, #tpu.memory_space<vmem>>, vector<2x5x7x7xf32>,
    %c0_99 = arith.constant 0 : index
    %c0_100 = arith.constant 0 : index
    %c1_101 = arith.constant 1 : index
    %c0_102 = arith.constant 0 : index
    %114 = tpu.strided_load %arg12[%c0_99, %c0_100, %c1_101, %c0_102] {strides = array<i32: 1, 1, 2, 1>} : memref<2x5x11x11xf32, #tpu.memory_space<vmem>>, vector<2x5x5x11xf32>
    %115 = tpu.transpose %114, [0, 1, 3, 2] : vector<2x5x5x11xf32> -> vector<2x5x11x5xf32>
    %c0_103 = arith.constant 0 : index
    %c0_104 = arith.constant 0 : index
    %c0_105 = arith.constant 0 : index
    %c0_106 = arith.constant 0 : index
    %116 = vector.load %arg13[%c0_103, %c0_104, %c0_105, %c0_106] : memref<2x5x11x5xf32, #tpu.memory_space<vmem>>, vector<2x5x11x5xf32>
    tpu.vector_store %arg13[%c0_103, %c0_104, %c0_105, %c0_106], %115 {strides = array<i32>} : memref<2x5x11x5xf32, #tpu.memory_space<vmem>>, vector<2x5x11x5xf32>,
    %c0_107 = arith.constant 0 : index
    %c0_108 = arith.constant 0 : index
    %c1_109 = arith.constant 1 : index
    %c0_110 = arith.constant 0 : index
    %117 = tpu.strided_load %arg13[%c0_107, %c0_108, %c1_109, %c0_110] {strides = array<i32: 1, 1, 2, 1>} : memref<2x5x11x5xf32, #tpu.memory_space<vmem>>, vector<2x5x5x5xf32>
    %118 = tpu.transpose %117, [0, 1, 3, 2] : vector<2x5x5x5xf32> -> vector<2x5x5x5xf32>
    %c0_111 = arith.constant 0 : index
    %c0_112 = arith.constant 0 : index
    %c1_113 = arith.constant 1 : index
    %c1_114 = arith.constant 1 : index
    %119 = vector.load %arg14[%c0_111, %c0_112, %c1_113, %c1_114] : memref<2x5x7x7xf32, #tpu.memory_space<vmem>>, vector<2x5x5x5xf32>
    tpu.vector_store %arg14[%c0_111, %c0_112, %c1_113, %c1_114], %118 {strides = array<i32>} : memref<2x5x7x7xf32, #tpu.memory_space<vmem>>, vector<2x5x5x5xf32>,
    %c0_115 = arith.constant 0 : index
    %120 = memref.load %arg5[%c0_115] : memref<15xf32, #tpu.memory_space<smem>>
    %c1_116 = arith.constant 1 : index
    %121 = memref.load %arg5[%c1_116] : memref<15xf32, #tpu.memory_space<smem>>
    %c2_117 = arith.constant 2 : index
    %122 = memref.load %arg5[%c2_117] : memref<15xf32, #tpu.memory_space<smem>>
    %c3_118 = arith.constant 3 : index
    %123 = memref.load %arg5[%c3_118] : memref<15xf32, #tpu.memory_space<smem>>
    %c4_119 = arith.constant 4 : index
    %124 = memref.load %arg5[%c4_119] : memref<15xf32, #tpu.memory_space<smem>>
    %c5 = arith.constant 5 : index
    %125 = memref.load %arg5[%c5] : memref<15xf32, #tpu.memory_space<smem>>
    %c6 = arith.constant 6 : index
    %126 = memref.load %arg5[%c6] : memref<15xf32, #tpu.memory_space<smem>>
    %c7 = arith.constant 7 : index
    %127 = memref.load %arg5[%c7] : memref<15xf32, #tpu.memory_space<smem>>
    %c8 = arith.constant 8 : index
    %128 = memref.load %arg5[%c8] : memref<15xf32, #tpu.memory_space<smem>>
    %c9 = arith.constant 9 : index
    %129 = memref.load %arg5[%c9] : memref<15xf32, #tpu.memory_space<smem>>
    %c10 = arith.constant 10 : index
    %130 = memref.load %arg5[%c10] : memref<15xf32, #tpu.memory_space<smem>>
    %c11 = arith.constant 11 : index
    %131 = memref.load %arg5[%c11] : memref<15xf32, #tpu.memory_space<smem>>
    %c12 = arith.constant 12 : index
    %132 = memref.load %arg5[%c12] : memref<15xf32, #tpu.memory_space<smem>>
    %c13 = arith.constant 13 : index
    %133 = memref.load %arg5[%c13] : memref<15xf32, #tpu.memory_space<smem>>
    %c14 = arith.constant 14 : index
    %134 = memref.load %arg5[%c14] : memref<15xf32, #tpu.memory_space<smem>>
    %c0_120 = arith.constant 0 : index
    %135 = memref.load %arg6[%c0_120] : memref<3xf32, #tpu.memory_space<smem>>
    %c1_121 = arith.constant 1 : index
    %136 = memref.load %arg6[%c1_121] : memref<3xf32, #tpu.memory_space<smem>>
    %c2_122 = arith.constant 2 : index
    %137 = memref.load %arg6[%c2_122] : memref<3xf32, #tpu.memory_space<smem>>
    %c0_123 = arith.constant 0 : index
    %c0_124 = arith.constant 0 : index
    %c0_125 = arith.constant 0 : index
    %c0_126 = arith.constant 0 : index
    %138 = vector.load %arg14[%c0_123, %c0_124, %c0_125, %c0_126] : memref<2x5x7x7xf32, #tpu.memory_space<vmem>>, vector<2x1x7x7xf32>
    %139 = vector.shape_cast %138 : vector<2x1x7x7xf32> to vector<2x7x7xf32>
    %c0_127 = arith.constant 0 : index
    %c1_128 = arith.constant 1 : index
    %c0_129 = arith.constant 0 : index
    %c0_130 = arith.constant 0 : index
    %140 = vector.load %arg14[%c0_127, %c1_128, %c0_129, %c0_130] : memref<2x5x7x7xf32, #tpu.memory_space<vmem>>, vector<2x1x7x7xf32>
    %141 = vector.shape_cast %140 : vector<2x1x7x7xf32> to vector<2x7x7xf32>
    %c0_131 = arith.constant 0 : index
    %c2_132 = arith.constant 2 : index
    %c0_133 = arith.constant 0 : index
    %c0_134 = arith.constant 0 : index
    %142 = vector.load %arg14[%c0_131, %c2_132, %c0_133, %c0_134] : memref<2x5x7x7xf32, #tpu.memory_space<vmem>>, vector<2x1x7x7xf32>
    %143 = vector.shape_cast %142 : vector<2x1x7x7xf32> to vector<2x7x7xf32>
    %c0_135 = arith.constant 0 : index
    %c3_136 = arith.constant 3 : index
    %c0_137 = arith.constant 0 : index
    %c0_138 = arith.constant 0 : index
    %144 = vector.load %arg14[%c0_135, %c3_136, %c0_137, %c0_138] : memref<2x5x7x7xf32, #tpu.memory_space<vmem>>, vector<2x1x7x7xf32>
    %145 = vector.shape_cast %144 : vector<2x1x7x7xf32> to vector<2x7x7xf32>
    %c0_139 = arith.constant 0 : index
    %c4_140 = arith.constant 4 : index
    %c0_141 = arith.constant 0 : index
    %c0_142 = arith.constant 0 : index
    %146 = vector.load %arg14[%c0_139, %c4_140, %c0_141, %c0_142] : memref<2x5x7x7xf32, #tpu.memory_space<vmem>>, vector<2x1x7x7xf32>
    %147 = vector.shape_cast %146 : vector<2x1x7x7xf32> to vector<2x7x7xf32>
    %148 = vector.broadcast %120 : f32 to vector<2x7x7xf32>
    %149 = arith.mulf %139, %148 : vector<2x7x7xf32>
    %150 = vector.broadcast %121 : f32 to vector<2x7x7xf32>
    %151 = arith.mulf %141, %150 : vector<2x7x7xf32>
    %152 = arith.addf %149, %151 : vector<2x7x7xf32>
    %153 = vector.broadcast %122 : f32 to vector<2x7x7xf32>
    %154 = arith.mulf %143, %153 : vector<2x7x7xf32>
    %155 = arith.addf %152, %154 : vector<2x7x7xf32>
    %156 = vector.broadcast %123 : f32 to vector<2x7x7xf32>
    %157 = arith.mulf %145, %156 : vector<2x7x7xf32>
    %158 = arith.addf %155, %157 : vector<2x7x7xf32>
    %159 = vector.broadcast %124 : f32 to vector<2x7x7xf32>
    %160 = arith.mulf %147, %159 : vector<2x7x7xf32>
    %161 = arith.addf %158, %160 : vector<2x7x7xf32>
    %162 = vector.broadcast %135 : f32 to vector<2x7x7xf32>
    %163 = arith.addf %161, %162 : vector<2x7x7xf32>
    %cst_143 = arith.constant 0.000000e+00 : f32
    %164 = vector.broadcast %cst_143 : f32 to vector<2x7x7xf32>
    %165 = arith.cmpf ogt, %163, %164 : vector<2x7x7xf32>
    %cst_144 = arith.constant -1.000000e-01 : f32
    %166 = vector.broadcast %cst_144 : f32 to vector<2x7x7xf32>
    %167 = arith.mulf %163, %166 : vector<2x7x7xf32>
    %168 = arith.select %165, %163, %167 : vector<2x7x7xi1>, vector<2x7x7xf32>
    %c0_145 = arith.constant 0 : index
    %c0_146 = arith.constant 0 : index
    %c0_147 = arith.constant 0 : index
    %c0_148 = arith.constant 0 : index
    %169 = vector.load %arg7[%c0_145, %c0_146, %c0_147, %c0_148] : memref<2x3x7x7xf32, #tpu.memory_space<vmem>>, vector<2x1x7x7xf32>
    %170 = vector.shape_cast %169 : vector<2x1x7x7xf32> to vector<2x7x7xf32>
    %171 = vector.shape_cast %168 : vector<2x7x7xf32> to vector<2x1x7x7xf32>
    tpu.vector_store %arg7[%c0_145, %c0_146, %c0_147, %c0_148], %171 {strides = array<i32>} : memref<2x3x7x7xf32, #tpu.memory_space<vmem>>, vector<2x1x7x7xf32>,
    %172 = vector.broadcast %125 : f32 to vector<2x7x7xf32>
    %173 = arith.mulf %139, %172 : vector<2x7x7xf32>
    %174 = vector.broadcast %126 : f32 to vector<2x7x7xf32>
    %175 = arith.mulf %141, %174 : vector<2x7x7xf32>
    %176 = arith.addf %173, %175 : vector<2x7x7xf32>
    %177 = vector.broadcast %127 : f32 to vector<2x7x7xf32>
    %178 = arith.mulf %143, %177 : vector<2x7x7xf32>
    %179 = arith.addf %176, %178 : vector<2x7x7xf32>
    %180 = vector.broadcast %128 : f32 to vector<2x7x7xf32>
    %181 = arith.mulf %145, %180 : vector<2x7x7xf32>
    %182 = arith.addf %179, %181 : vector<2x7x7xf32>
    %183 = vector.broadcast %129 : f32 to vector<2x7x7xf32>
    %184 = arith.mulf %147, %183 : vector<2x7x7xf32>
    %185 = arith.addf %182, %184 : vector<2x7x7xf32>
    %186 = vector.broadcast %136 : f32 to vector<2x7x7xf32>
    %187 = arith.addf %185, %186 : vector<2x7x7xf32>
    %cst_149 = arith.constant 0.000000e+00 : f32
    %188 = vector.broadcast %cst_149 : f32 to vector<2x7x7xf32>
    %189 = arith.cmpf ogt, %187, %188 : vector<2x7x7xf32>
    %cst_150 = arith.constant -1.000000e-01 : f32
    %190 = vector.broadcast %cst_150 : f32 to vector<2x7x7xf32>
    %191 = arith.mulf %187, %190 : vector<2x7x7xf32>
    %192 = arith.select %189, %187, %191 : vector<2x7x7xi1>, vector<2x7x7xf32>
    %c0_151 = arith.constant 0 : index
    %c1_152 = arith.constant 1 : index
    %c0_153 = arith.constant 0 : index
    %c0_154 = arith.constant 0 : index
    %193 = vector.load %arg7[%c0_151, %c1_152, %c0_153, %c0_154] : memref<2x3x7x7xf32, #tpu.memory_space<vmem>>, vector<2x1x7x7xf32>
    %194 = vector.shape_cast %193 : vector<2x1x7x7xf32> to vector<2x7x7xf32>
    %195 = vector.shape_cast %192 : vector<2x7x7xf32> to vector<2x1x7x7xf32>
    tpu.vector_store %arg7[%c0_151, %c1_152, %c0_153, %c0_154], %195 {strides = array<i32>} : memref<2x3x7x7xf32, #tpu.memory_space<vmem>>, vector<2x1x7x7xf32>,
    %196 = vector.broadcast %130 : f32 to vector<2x7x7xf32>
    %197 = arith.mulf %139, %196 : vector<2x7x7xf32>
    %198 = vector.broadcast %131 : f32 to vector<2x7x7xf32>
    %199 = arith.mulf %141, %198 : vector<2x7x7xf32>
    %200 = arith.addf %197, %199 : vector<2x7x7xf32>
    %201 = vector.broadcast %132 : f32 to vector<2x7x7xf32>
    %202 = arith.mulf %143, %201 : vector<2x7x7xf32>
    %203 = arith.addf %200, %202 : vector<2x7x7xf32>
    %204 = vector.broadcast %133 : f32 to vector<2x7x7xf32>
    %205 = arith.mulf %145, %204 : vector<2x7x7xf32>
    %206 = arith.addf %203, %205 : vector<2x7x7xf32>
    %207 = vector.broadcast %134 : f32 to vector<2x7x7xf32>
    %208 = arith.mulf %147, %207 : vector<2x7x7xf32>
    %209 = arith.addf %206, %208 : vector<2x7x7xf32>
    %210 = vector.broadcast %137 : f32 to vector<2x7x7xf32>
    %211 = arith.addf %209, %210 : vector<2x7x7xf32>
    %cst_155 = arith.constant 0.000000e+00 : f32
    %212 = vector.broadcast %cst_155 : f32 to vector<2x7x7xf32>
    %213 = arith.cmpf ogt, %211, %212 : vector<2x7x7xf32>
    %cst_156 = arith.constant -1.000000e-01 : f32
    %214 = vector.broadcast %cst_156 : f32 to vector<2x7x7xf32>
    %215 = arith.mulf %211, %214 : vector<2x7x7xf32>
    %216 = arith.select %213, %211, %215 : vector<2x7x7xi1>, vector<2x7x7xf32>
    %c0_157 = arith.constant 0 : index
    %c2_158 = arith.constant 2 : index
    %c0_159 = arith.constant 0 : index
    %c0_160 = arith.constant 0 : index
    %217 = vector.load %arg7[%c0_157, %c2_158, %c0_159, %c0_160] : memref<2x3x7x7xf32, #tpu.memory_space<vmem>>, vector<2x1x7x7xf32>
    %218 = vector.shape_cast %217 : vector<2x1x7x7xf32> to vector<2x7x7xf32>
    %219 = vector.shape_cast %216 : vector<2x7x7xf32> to vector<2x1x7x7xf32>
    tpu.vector_store %arg7[%c0_157, %c2_158, %c0_159, %c0_160], %219 {strides = array<i32>} : memref<2x3x7x7xf32, #tpu.memory_space<vmem>>, vector<2x1x7x7xf32>,
    return
  }
}

</mosaic_0001>

<llo_original>
// kernel: model_forward.1
$region0: #{model_forward.1}
  #allocation0 [shape = 'u32[]', space=smem, size = 0x4, offset = 0x4, fixed_abs, tag = 'smem constant byte address 0x4 - core index']
  #allocation1 [shape = 'u32[144,128]{1,0:T(1,128)}', space=vmem, size = 0x12000, scoped, tag = 'internal scratch']
  #allocation2 [shape = 'f32[2,3,16,8]{3,2,1,0:T(8,128)}', space=vmem, size = 0xc000, scoped, tag = 'scratch operand']
  #allocation3 [shape = 'f32[2,3,9,9]{3,2,1,0:T(8,128)}', space=vmem, size = 0xc000, scoped, tag = 'scratch operand']
  #allocation4 [shape = 'f32[2,1,9,9]{3,2,1,0:T(8,128)}', space=vmem, size = 0x4000, scoped, tag = 'scratch operand']
  #allocation5 [shape = 'f32[2,1,11,11]{3,2,1,0:T(8,128)}', space=vmem, size = 0x4000, scoped, tag = 'scratch operand']
  #allocation6 [shape = 'f32[2,5,11,11]{3,2,1,0:T(8,128)}', space=vmem, size = 0x14000, scoped, tag = 'scratch operand']
  #allocation7 [shape = 'f32[2,5,11,5]{3,2,1,0:T(8,128)}', space=vmem, size = 0x14000, scoped, tag = 'scratch operand']
  #allocation8 [shape = 'f32[2,5,7,7]{3,2,1,0:T(8,128)}', space=vmem, size = 0xa000, scoped, tag = 'scratch operand']
  #allocation9 [shape = 'f32[1]{0:T(128)S(6)}', space=smem, size = 0x200, scoped, tag = 'scoped memory for model_forward.1']
  %s0 = inlined_call_operand.hbm [shape: f32[2,3,16,16], index: 0, kind: input, shape index: {}]
  %s1 = inlined_call_operand.vmem [shape: f32[3], index: 1, kind: input, shape index: {}]
  %s2 = inlined_call_operand.<no memory space> [shape: f32[1], index: 2, kind: input, shape index: {}]
  %s3 = inlined_call_operand.vmem [shape: f32[5], index: 3, kind: input, shape index: {}]
  %s4 = inlined_call_operand.vmem [shape: f32[5], index: 4, kind: input, shape index: {}]
  %s5 = inlined_call_operand.vmem [shape: f32[15], index: 5, kind: input, shape index: {}]
  %s6 = inlined_call_operand.vmem [shape: f32[3], index: 6, kind: input, shape index: {}]
  %s7 = inlined_call_operand.vmem [shape: f32[2,3,7,7], index: 7, kind: output, shape index: {}]
  %s8 = sld [smem:[#allocation0]]
  $region62: #{model_forward.1} parent=0
    _
  %s10 = ssub.s32 1, %s8
  %s11 = scalar_select 0, %s10, %s8
  %12 = sst [smem:[#allocation9]] %s2
  $region1: #{model_forward.1} parent=0
    #allocation10 [shape = 'u8[49152]{0}', space=vmem, size = 0xc000, scoped, tag = 'input window, operand 0, single buffered']
    #allocation11 [shape = 's32[1]{0}', space=sflag, size = 0x4, scoped, tag = 'scoped memory for model_forward.1']
    #allocation12 [shape = 's32[1]{0}', space=sflag, size = 0x4, scoped, tag = 'scoped memory for model_forward.1']
    #allocation13 [shape = 'u8[512]{0}', space=smem, size = 0x200, scoped, tag = 'input window, operand 1, single buffered']
    #allocation14 [shape = 'u8[512]{0}', space=smem, size = 0x200, scoped, tag = 'input window, operand 3, single buffered']
    #allocation15 [shape = 's32[1]{0}', space=sflag, size = 0x4, scoped, tag = 'scoped memory for model_forward.1']
    #allocation16 [shape = 'u8[512]{0}', space=smem, size = 0x200, scoped, tag = 'input window, operand 4, single buffered']
    #allocation17 [shape = 'u8[512]{0}', space=smem, size = 0x200, scoped, tag = 'input window, operand 5, single buffered']
    #allocation18 [shape = 's32[1]{0}', space=sflag, size = 0x4, scoped, tag = 'scoped memory for model_forward.1']
    #allocation19 [shape = 'u8[512]{0}', space=smem, size = 0x200, scoped, tag = 'input window, operand 6, single buffered']
    %13 = vsyncpa [#allocation11], 0
    %14 = vsyncpa [#allocation12], 0
    %15 = vsyncpa [#allocation15], 0
    %16 = vsyncpa [#allocation18], 0
    // Predicated region
    $region2: #{model_forward.1} parent=1 // pred_check
      _
    $region3: #{model_forward.1} parent=1 // pred_check_branch
      %18 = sbr.rel (0) target = $region5
    $region4: #{model_forward.1} parent=1 // pred_region
      %s20 = ssub.s32 1536, 1536
      %21 = vsyncadd [#allocation11], %s20
      %s22 = sshll.u32 [#allocation10], 4
      %s23 = int_to_ptr.vmem [resolvable:$true] %s22
      %28 = dma.hbm_to_vmem [thread:$0]  %s0, 1536, %s23, [#allocation11], 128, 128, 8
    $region5: #{model_forward.1} parent=1 // pred_fallthru
      _
    // Predicated region
    $region6: #{model_forward.1} parent=1 // pred_check
      _
    $region7: #{model_forward.1} parent=1 // pred_check_branch
      %30 = sbr.rel (0) target = $region9
    $region8: #{model_forward.1} parent=1 // pred_region
      %s32 = ssub.s32 16, 16
      %33 = vsyncadd [#allocation12], %s32
      %s35 = sshll.u32 %s1, 4
      %s36 = int_to_ptr.vmem [resolvable:$true] %s35
      %38 = dma.vmem_to_smem %s36, 16, [#allocation13], [#allocation12]
    $region9: #{model_forward.1} parent=1 // pred_fallthru
      _
    // Predicated region
    $region10: #{model_forward.1} parent=1 // pred_check
      _
    $region11: #{model_forward.1} parent=1 // pred_check_branch
      %40 = sbr.rel (0) target = $region13
    $region12: #{model_forward.1} parent=1 // pred_region
      _
    $region13: #{model_forward.1} parent=1 // pred_fallthru
      _
    // Predicated region
    $region14: #{model_forward.1} parent=1 // pred_check
      _
    $region15: #{model_forward.1} parent=1 // pred_check_branch
      %42 = sbr.rel (0) target = $region17
    $region16: #{model_forward.1} parent=1 // pred_region
      %s44 = ssub.s32 16, 16
      %45 = vsyncadd [#allocation15], %s44
      %s47 = sshll.u32 %s3, 4
      %s48 = int_to_ptr.vmem [resolvable:$true] %s47
      %50 = dma.vmem_to_smem %s48, 16, [#allocation14], [#allocation15]
    $region17: #{model_forward.1} parent=1 // pred_fallthru
      _
    // Predicated region
    $region18: #{model_forward.1} parent=1 // pred_check
      _
    $region19: #{model_forward.1} parent=1 // pred_check_branch
      %52 = sbr.rel (0) target = $region21
    $region20: #{model_forward.1} parent=1 // pred_region
      %s54 = ssub.s32 16, 16
      %55 = vsyncadd [#allocation15], %s54
      %s57 = sshll.u32 %s4, 4
      %s58 = int_to_ptr.vmem [resolvable:$true] %s57
      %60 = dma.vmem_to_smem %s58, 16, [#allocation16], [#allocation15]
    $region21: #{model_forward.1} parent=1 // pred_fallthru
      _
    // Predicated region
    $region22: #{model_forward.1} parent=1 // pred_check
      _
    $region23: #{model_forward.1} parent=1 // pred_check_branch
      %62 = sbr.rel (0) target = $region25
    $region24: #{model_forward.1} parent=1 // pred_region
      %s64 = ssub.s32 16, 16
      %65 = vsyncadd [#allocation18], %s64
      %s67 = sshll.u32 %s5, 4
      %s68 = int_to_ptr.vmem [resolvable:$true] %s67
      %70 = dma.vmem_to_smem %s68, 16, [#allocation17], [#allocation18]
    $region25: #{model_forward.1} parent=1 // pred_fallthru
      _
    // Predicated region
    $region26: #{model_forward.1} parent=1 // pred_check
      _
    $region27: #{model_forward.1} parent=1 // pred_check_branch
      %72 = sbr.rel (0) target = $region29
    $region28: #{model_forward.1} parent=1 // pred_region
      %s74 = ssub.s32 16, 16
      %75 = vsyncadd [#allocation18], %s74
      %s77 = sshll.u32 %s6, 4
      %s78 = int_to_ptr.vmem [resolvable:$true] %s77
      %80 = dma.vmem_to_smem %s78, 16, [#allocation19], [#allocation18]
    $region29: #{model_forward.1} parent=1 // pred_fallthru
      _
    // Predicated region
    $region30: #{model_forward.1} parent=1 // pred_check
      _
    $region31: #{model_forward.1} parent=1 // pred_check_branch
      %82 = sbr.rel (0) target = $region33
    $region32: #{model_forward.1} parent=1 // pred_region
      %83 = dma.done [#allocation11], 1536
    $region33: #{model_forward.1} parent=1 // pred_fallthru
      _
    // Predicated region
    $region34: #{model_forward.1} parent=1 // pred_check
      _
    $region35: #{model_forward.1} parent=1 // pred_check_branch
      %85 = sbr.rel (0) target = $region37
    $region36: #{model_forward.1} parent=1 // pred_region
      %86 = dma.done [#allocation12], 16
    $region37: #{model_forward.1} parent=1 // pred_fallthru
      _
    // Predicated region
    $region38: #{model_forward.1} parent=1 // pred_check
      _
    $region39: #{model_forward.1} parent=1 // pred_check_branch
      %88 = sbr.rel (0) target = $region41
    $region40: #{model_forward.1} parent=1 // pred_region
      %89 = dma.done [#allocation15], 16
    $region41: #{model_forward.1} parent=1 // pred_fallthru
      _
    // Predicated region
    $region42: #{model_forward.1} parent=1 // pred_check
      _
    $region43: #{model_forward.1} parent=1 // pred_check_branch
      %91 = sbr.rel (0) target = $region45
    $region44: #{model_forward.1} parent=1 // pred_region
      %92 = dma.done [#allocation15], 16
    $region45: #{model_forward.1} parent=1 // pred_fallthru
      _
    // Predicated region
    $region46: #{model_forward.1} parent=1 // pred_check
      _
    $region47: #{model_forward.1} parent=1 // pred_check_branch
      %94 = sbr.rel (0) target = $region49
    $region48: #{model_forward.1} parent=1 // pred_region
      %95 = dma.done [#allocation18], 16
    $region49: #{model_forward.1} parent=1 // pred_fallthru
      _
    // Predicated region
    $region50: #{model_forward.1} parent=1 // pred_check
      _
    $region51: #{model_forward.1} parent=1 // pred_check_branch
      %97 = sbr.rel (0) target = $region53
    $region52: #{model_forward.1} parent=1 // pred_region
      %98 = dma.done [#allocation18], 16
    $region53: #{model_forward.1} parent=1 // pred_fallthru
      _
    %99 = sfence
    %vm100 = vcmask 72704
    %101 = vst.msk [vmem:[#allocation3] sm:$0xff] %vm100, 0.0
    %vm102 = vcmask 65536
    %103 = vst.msk [vmem:[#allocation3 + $0x8] sm:$0x1] %vm102, 0.0
    %104 = vst.msk [vmem:[#allocation3 + $0x10] sm:$0xff] %vm100, 0.0
    %105 = vst.msk [vmem:[#allocation3 + $0x18] sm:$0x1] %vm102, 0.0
    %106 = vst.msk [vmem:[#allocation3 + $0x20] sm:$0xff] %vm100, 0.0
    %107 = vst.msk [vmem:[#allocation3 + $0x28] sm:$0x1] %vm102, 0.0
    %108 = vst.msk [vmem:[#allocation3 + $0x30] sm:$0xff] %vm100, 0.0
    %109 = vst.msk [vmem:[#allocation3 + $0x38] sm:$0x1] %vm102, 0.0
    %110 = vst.msk [vmem:[#allocation3 + $0x40] sm:$0xff] %vm100, 0.0
    %111 = vst.msk [vmem:[#allocation3 + $0x48] sm:$0x1] %vm102, 0.0
    %112 = vst.msk [vmem:[#allocation3 + $0x50] sm:$0xff] %vm100, 0.0
    %113 = vst.msk [vmem:[#allocation3 + $0x58] sm:$0x1] %vm102, 0.0
    %s114 = scalar_lea.vmem [#allocation10], 1
    %v115 = vld [vmem:[%s114] ss:$2 sm:$0xff]
    %s116 = scalar_lea.vmem [#allocation10], 17
    %v117 = vld [vmem:[%s116] ss:$2 sm:$0xff]
    %s118 = scalar_lea.vmem [#allocation10], 33
    %v119 = vld [vmem:[%s118] ss:$2 sm:$0xff]
    %s120 = scalar_lea.vmem [#allocation10], 49
    %v121 = vld [vmem:[%s120] ss:$2 sm:$0xff]
    %s122 = scalar_lea.vmem [#allocation10], 65
    %v123 = vld [vmem:[%s122] ss:$2 sm:$0xff]
    %s124 = scalar_lea.vmem [#allocation10], 81
    %v125 = vld [vmem:[%s124] ss:$2 sm:$0xff]
    %126 = vxpose.xlu0.b32.start [1/16] %v115, 128
    %127 = vxpose.xlu0.b32.cont [2/16] 0.0, 128
    %128 = vxpose.xlu0.b32.cont [3/16] 0.0, 128
    %129 = vxpose.xlu0.b32.cont [4/16] 0.0, 128
    %130 = vxpose.xlu0.b32.cont [5/16] 0.0, 128
    %131 = vxpose.xlu0.b32.cont [6/16] 0.0, 128
    %132 = vxpose.xlu0.b32.cont [7/16] 0.0, 128
    %133 = vxpose.xlu0.b32.cont [8/16] 0.0, 128
    %134 = vxpose.xlu0.b32.cont [9/16] 0.0, 128
    %135 = vxpose.xlu0.b32.cont [10/16] 0.0, 128
    %136 = vxpose.xlu0.b32.cont [11/16] 0.0, 128
    %137 = vxpose.xlu0.b32.cont [12/16] 0.0, 128
    %138 = vxpose.xlu0.b32.cont [13/16] 0.0, 128
    %139 = vxpose.xlu0.b32.cont [14/16] 0.0, 128
    %140 = vxpose.xlu0.b32.cont [15/16] 0.0, 128
    %141 = vxpose.xlu0.b32.end [16/16] 0.0, 128
    %v142 = vpop.trf.xlu0
    %v143 = vpop.trf.xlu0
    %v144 = vpop.trf.xlu0
    %v145 = vpop.trf.xlu0
    %v146 = vpop.trf.xlu0
    %v147 = vpop.trf.xlu0
    %v148 = vpop.trf.xlu0
    %v149 = vpop.trf.xlu0
    %v150 = vpop.trf.xlu0
    %v151 = vpop.trf.xlu0
    %v152 = vpop.trf.xlu0
    %v153 = vpop.trf.xlu0
    %v154 = vpop.trf.xlu0
    %v155 = vpop.trf.xlu0
    %v156 = vpop.trf.xlu0
    %v157 = vpop.trf.xlu0
    %158 = vxpose.xlu0.b32.start [1/16] %v117, 128
    %159 = vxpose.xlu0.b32.cont [2/16] 0.0, 128
    %160 = vxpose.xlu0.b32.cont [3/16] 0.0, 128
    %161 = vxpose.xlu0.b32.cont [4/16] 0.0, 128
    %162 = vxpose.xlu0.b32.cont [5/16] 0.0, 128
    %163 = vxpose.xlu0.b32.cont [6/16] 0.0, 128
    %164 = vxpose.xlu0.b32.cont [7/16] 0.0, 128
    %165 = vxpose.xlu0.b32.cont [8/16] 0.0, 128
    %166 = vxpose.xlu0.b32.cont [9/16] 0.0, 128
    %167 = vxpose.xlu0.b32.cont [10/16] 0.0, 128
    %168 = vxpose.xlu0.b32.cont [11/16] 0.0, 128
    %169 = vxpose.xlu0.b32.cont [12/16] 0.0, 128
    %170 = vxpose.xlu0.b32.cont [13/16] 0.0, 128
    %171 = vxpose.xlu0.b32.cont [14/16] 0.0, 128
    %172 = vxpose.xlu0.b32.cont [15/16] 0.0, 128
    %173 = vxpose.xlu0.b32.end [16/16] 0.0, 128
    %v174 = vpop.trf.xlu0
    %v175 = vpop.trf.xlu0
    %v176 = vpop.trf.xlu0
    %v177 = vpop.trf.xlu0
    %v178 = vpop.trf.xlu0
    %v179 = vpop.trf.xlu0
    %v180 = vpop.trf.xlu0
    %v181 = vpop.trf.xlu0
    %v182 = vpop.trf.xlu0
    %v183 = vpop.trf.xlu0
    %v184 = vpop.trf.xlu0
    %v185 = vpop.trf.xlu0
    %v186 = vpop.trf.xlu0
    %v187 = vpop.trf.xlu0
    %v188 = vpop.trf.xlu0
    %v189 = vpop.trf.xlu0
    %190 = vxpose.xlu0.b32.start [1/16] %v119, 128
    %191 = vxpose.xlu0.b32.cont [2/16] 0.0, 128
    %192 = vxpose.xlu0.b32.cont [3/16] 0.0, 128
    %193 = vxpose.xlu0.b32.cont [4/16] 0.0, 128
    %194 = vxpose.xlu0.b32.cont [5/16] 0.0, 128
    %195 = vxpose.xlu0.b32.cont [6/16] 0.0, 128
    %196 = vxpose.xlu0.b32.cont [7/16] 0.0, 128
    %197 = vxpose.xlu0.b32.cont [8/16] 0.0, 128
    %198 = vxpose.xlu0.b32.cont [9/16] 0.0, 128
    %199 = vxpose.xlu0.b32.cont [10/16] 0.0, 128
    %200 = vxpose.xlu0.b32.cont [11/16] 0.0, 128
    %201 = vxpose.xlu0.b32.cont [12/16] 0.0, 128
    %202 = vxpose.xlu0.b32.cont [13/16] 0.0, 128
    %203 = vxpose.xlu0.b32.cont [14/16] 0.0, 128
    %204 = vxpose.xlu0.b32.cont [15/16] 0.0, 128
    %205 = vxpose.xlu0.b32.end [16/16] 0.0, 128
    %v206 = vpop.trf.xlu0
    %v207 = vpop.trf.xlu0
    %v208 = vpop.trf.xlu0
    %v209 = vpop.trf.xlu0
    %v210 = vpop.trf.xlu0
    %v211 = vpop.trf.xlu0
    %v212 = vpop.trf.xlu0
    %v213 = vpop.trf.xlu0
    %v214 = vpop.trf.xlu0
    %v215 = vpop.trf.xlu0
    %v216 = vpop.trf.xlu0
    %v217 = vpop.trf.xlu0
    %v218 = vpop.trf.xlu0
    %v219 = vpop.trf.xlu0
    %v220 = vpop.trf.xlu0
    %v221 = vpop.trf.xlu0
    %222 = vxpose.xlu0.b32.start [1/16] %v121, 128
    %223 = vxpose.xlu0.b32.cont [2/16] 0.0, 128
    %224 = vxpose.xlu0.b32.cont [3/16] 0.0, 128
    %225 = vxpose.xlu0.b32.cont [4/16] 0.0, 128
    %226 = vxpose.xlu0.b32.cont [5/16] 0.0, 128
    %227 = vxpose.xlu0.b32.cont [6/16] 0.0, 128
    %228 = vxpose.xlu0.b32.cont [7/16] 0.0, 128
    %229 = vxpose.xlu0.b32.cont [8/16] 0.0, 128
    %230 = vxpose.xlu0.b32.cont [9/16] 0.0, 128
    %231 = vxpose.xlu0.b32.cont [10/16] 0.0, 128
    %232 = vxpose.xlu0.b32.cont [11/16] 0.0, 128
    %233 = vxpose.xlu0.b32.cont [12/16] 0.0, 128
    %234 = vxpose.xlu0.b32.cont [13/16] 0.0, 128
    %235 = vxpose.xlu0.b32.cont [14/16] 0.0, 128
    %236 = vxpose.xlu0.b32.cont [15/16] 0.0, 128
    %237 = vxpose.xlu0.b32.end [16/16] 0.0, 128
    %v238 = vpop.trf.xlu0
    %v239 = vpop.trf.xlu0
    %v240 = vpop.trf.xlu0
    %v241 = vpop.trf.xlu0
    %v242 = vpop.trf.xlu0
    %v243 = vpop.trf.xlu0
    %v244 = vpop.trf.xlu0
    %v245 = vpop.trf.xlu0
    %v246 = vpop.trf.xlu0
    %v247 = vpop.trf.xlu0
    %v248 = vpop.trf.xlu0
    %v249 = vpop.trf.xlu0
    %v250 = vpop.trf.xlu0
    %v251 = vpop.trf.xlu0
    %v252 = vpop.trf.xlu0
    %v253 = vpop.trf.xlu0
    %254 = vxpose.xlu0.b32.start [1/16] %v123, 128
    %255 = vxpose.xlu0.b32.cont [2/16] 0.0, 128
    %256 = vxpose.xlu0.b32.cont [3/16] 0.0, 128
    %257 = vxpose.xlu0.b32.cont [4/16] 0.0, 128
    %258 = vxpose.xlu0.b32.cont [5/16] 0.0, 128
    %259 = vxpose.xlu0.b32.cont [6/16] 0.0, 128
    %260 = vxpose.xlu0.b32.cont [7/16] 0.0, 128
    %261 = vxpose.xlu0.b32.cont [8/16] 0.0, 128
    %262 = vxpose.xlu0.b32.cont [9/16] 0.0, 128
    %263 = vxpose.xlu0.b32.cont [10/16] 0.0, 128
    %264 = vxpose.xlu0.b32.cont [11/16] 0.0, 128
    %265 = vxpose.xlu0.b32.cont [12/16] 0.0, 128
    %266 = vxpose.xlu0.b32.cont [13/16] 0.0, 128
    %267 = vxpose.xlu0.b32.cont [14/16] 0.0, 128
    %268 = vxpose.xlu0.b32.cont [15/16] 0.0, 128
    %269 = vxpose.xlu0.b32.end [16/16] 0.0, 128
    %v270 = vpop.trf.xlu0
    %v271 = vpop.trf.xlu0
    %v272 = vpop.trf.xlu0
    %v273 = vpop.trf.xlu0
    %v274 = vpop.trf.xlu0
    %v275 = vpop.trf.xlu0
    %v276 = vpop.trf.xlu0
    %v277 = vpop.trf.xlu0
    %v278 = vpop.trf.xlu0
    %v279 = vpop.trf.xlu0
    %v280 = vpop.trf.xlu0
    %v281 = vpop.trf.xlu0
    %v282 = vpop.trf.xlu0
    %v283 = vpop.trf.xlu0
    %v284 = vpop.trf.xlu0
    %v285 = vpop.trf.xlu0
    %286 = vxpose.xlu0.b32.start [1/16] %v125, 128
    %287 = vxpose.xlu0.b32.cont [2/16] 0.0, 128
    %288 = vxpose.xlu0.b32.cont [3/16] 0.0, 128
    %289 = vxpose.xlu0.b32.cont [4/16] 0.0, 128
    %290 = vxpose.xlu0.b32.cont [5/16] 0.0, 128
    %291 = vxpose.xlu0.b32.cont [6/16] 0.0, 128
    %292 = vxpose.xlu0.b32.cont [7/16] 0.0, 128
    %293 = vxpose.xlu0.b32.cont [8/16] 0.0, 128
    %294 = vxpose.xlu0.b32.cont [9/16] 0.0, 128
    %295 = vxpose.xlu0.b32.cont [10/16] 0.0, 128
    %296 = vxpose.xlu0.b32.cont [11/16] 0.0, 128
    %297 = vxpose.xlu0.b32.cont [12/16] 0.0, 128
    %298 = vxpose.xlu0.b32.cont [13/16] 0.0, 128
    %299 = vxpose.xlu0.b32.cont [14/16] 0.0, 128
    %300 = vxpose.xlu0.b32.cont [15/16] 0.0, 128
    %301 = vxpose.xlu0.b32.end [16/16] 0.0, 128
    %v302 = vpop.trf.xlu0
    %v303 = vpop.trf.xlu0
    %v304 = vpop.trf.xlu0
    %v305 = vpop.trf.xlu0
    %v306 = vpop.trf.xlu0
    %v307 = vpop.trf.xlu0
    %v308 = vpop.trf.xlu0
    %v309 = vpop.trf.xlu0
    %v310 = vpop.trf.xlu0
    %v311 = vpop.trf.xlu0
    %v312 = vpop.trf.xlu0
    %v313 = vpop.trf.xlu0
    %v314 = vpop.trf.xlu0
    %v315 = vpop.trf.xlu0
    %v316 = vpop.trf.xlu0
    %v317 = vpop.trf.xlu0
    %vm318 = vcmask 64512
    %319 = vst.msk [vmem:[#allocation2] sm:$0xff] %vm318, %v142
    %320 = vst.msk [vmem:[#allocation2 + $0x8] sm:$0xff] %vm318, %v143
    %321 = vst.msk [vmem:[#allocation2 + $0x10] sm:$0xff] %vm318, %v174
    %322 = vst.msk [vmem:[#allocation2 + $0x18] sm:$0xff] %vm318, %v175
    %323 = vst.msk [vmem:[#allocation2 + $0x20] sm:$0xff] %vm318, %v206
    %324 = vst.msk [vmem:[#allocation2 + $0x28] sm:$0xff] %vm318, %v207
    %325 = vst.msk [vmem:[#allocation2 + $0x30] sm:$0xff] %vm318, %v238
    %326 = vst.msk [vmem:[#allocation2 + $0x38] sm:$0xff] %vm318, %v239
    %327 = vst.msk [vmem:[#allocation2 + $0x40] sm:$0xff] %vm318, %v270
    %328 = vst.msk [vmem:[#allocation2 + $0x48] sm:$0xff] %vm318, %v271
    %329 = vst.msk [vmem:[#allocation2 + $0x50] sm:$0xff] %vm318, %v302
    %330 = vst.msk [vmem:[#allocation2 + $0x58] sm:$0xff] %vm318, %v303
    %s331 = scalar_lea.vmem [#allocation2], 1
    %v332 = vld [vmem:[%s331] ss:$2 sm:$0xff]
    %s333 = scalar_lea.vmem [#allocation2], 17
    %v334 = vld [vmem:[%s333] ss:$2 sm:$0xff]
    %s335 = scalar_lea.vmem [#allocation2], 33
    %v336 = vld [vmem:[%s335] ss:$2 sm:$0xff]
    %s337 = scalar_lea.vmem [#allocation2], 49
    %v338 = vld [vmem:[%s337] ss:$2 sm:$0xff]
    %s339 = scalar_lea.vmem [#allocation2], 65
    %v340 = vld [vmem:[%s339] ss:$2 sm:$0xff]
    %s341 = scalar_lea.vmem [#allocation2], 81
    %v342 = vld [vmem:[%s341] ss:$2 sm:$0xff]
    %343 = vxpose.xlu0.b32.start [1/16] %v332, 128
    %344 = vxpose.xlu0.b32.cont [2/16] 0.0, 128
    %345 = vxpose.xlu0.b32.cont [3/16] 0.0, 128
    %346 = vxpose.xlu0.b32.cont [4/16] 0.0, 128
    %347 = vxpose.xlu0.b32.cont [5/16] 0.0, 128
    %348 = vxpose.xlu0.b32.cont [6/16] 0.0, 128
    %349 = vxpose.xlu0.b32.cont [7/16] 0.0, 128
    %350 = vxpose.xlu0.b32.cont [8/16] 0.0, 128
    %351 = vxpose.xlu0.b32.cont [9/16] 0.0, 128
    %352 = vxpose.xlu0.b32.cont [10/16] 0.0, 128
    %353 = vxpose.xlu0.b32.cont [11/16] 0.0, 128
    %354 = vxpose.xlu0.b32.cont [12/16] 0.0, 128
    %355 = vxpose.xlu0.b32.cont [13/16] 0.0, 128
    %356 = vxpose.xlu0.b32.cont [14/16] 0.0, 128
    %357 = vxpose.xlu0.b32.cont [15/16] 0.0, 128
    %358 = vxpose.xlu0.b32.end [16/16] 0.0, 128
    %v359 = vpop.trf.xlu0
    %v360 = vpop.trf.xlu0
    %v361 = vpop.trf.xlu0
    %v362 = vpop.trf.xlu0
    %v363 = vpop.trf.xlu0
    %v364 = vpop.trf.xlu0
    %v365 = vpop.trf.xlu0
    %v366 = vpop.trf.xlu0
    %v367 = vpop.trf.xlu0
    %v368 = vpop.trf.xlu0
    %v369 = vpop.trf.xlu0
    %v370 = vpop.trf.xlu0
    %v371 = vpop.trf.xlu0
    %v372 = vpop.trf.xlu0
    %v373 = vpop.trf.xlu0
    %v374 = vpop.trf.xlu0
    %375 = vxpose.xlu0.b32.start [1/16] %v334, 128
    %376 = vxpose.xlu0.b32.cont [2/16] 0.0, 128
    %377 = vxpose.xlu0.b32.cont [3/16] 0.0, 128
    %378 = vxpose.xlu0.b32.cont [4/16] 0.0, 128
    %379 = vxpose.xlu0.b32.cont [5/16] 0.0, 128
    %380 = vxpose.xlu0.b32.cont [6/16] 0.0, 128
    %381 = vxpose.xlu0.b32.cont [7/16] 0.0, 128
    %382 = vxpose.xlu0.b32.cont [8/16] 0.0, 128
    %383 = vxpose.xlu0.b32.cont [9/16] 0.0, 128
    %384 = vxpose.xlu0.b32.cont [10/16] 0.0, 128
    %385 = vxpose.xlu0.b32.cont [11/16] 0.0, 128
    %386 = vxpose.xlu0.b32.cont [12/16] 0.0, 128
    %387 = vxpose.xlu0.b32.cont [13/16] 0.0, 128
    %388 = vxpose.xlu0.b32.cont [14/16] 0.0, 128
    %389 = vxpose.xlu0.b32.cont [15/16] 0.0, 128
    %390 = vxpose.xlu0.b32.end [16/16] 0.0, 128
    %v391 = vpop.trf.xlu0
    %v392 = vpop.trf.xlu0
    %v393 = vpop.trf.xlu0
    %v394 = vpop.trf.xlu0
    %v395 = vpop.trf.xlu0
    %v396 = vpop.trf.xlu0
    %v397 = vpop.trf.xlu0
    %v398 = vpop.trf.xlu0
    %v399 = vpop.trf.xlu0
    %v400 = vpop.trf.xlu0
    %v401 = vpop.trf.xlu0
    %v402 = vpop.trf.xlu0
    %v403 = vpop.trf.xlu0
    %v404 = vpop.trf.xlu0
    %v405 = vpop.trf.xlu0
    %v406 = vpop.trf.xlu0
    %407 = vxpose.xlu0.b32.start [1/16] %v336, 128
    %408 = vxpose.xlu0.b32.cont [2/16] 0.0, 128
    %409 = vxpose.xlu0.b32.cont [3/16] 0.0, 128
    %410 = vxpose.xlu0.b32.cont [4/16] 0.0, 128
    %411 = vxpose.xlu0.b32.cont [5/16] 0.0, 128
    %412 = vxpose.xlu0.b32.cont [6/16] 0.0, 128
    %413 = vxpose.xlu0.b32.cont [7/16] 0.0, 128
    %414 = vxpose.xlu0.b32.cont [8/16] 0.0, 128
    %415 = vxpose.xlu0.b32.cont [9/16] 0.0, 128
    %416 = vxpose.xlu0.b32.cont [10/16] 0.0, 128
    %417 = vxpose.xlu0.b32.cont [11/16] 0.0, 128
    %418 = vxpose.xlu0.b32.cont [12/16] 0.0, 128
    %419 = vxpose.xlu0.b32.cont [13/16] 0.0, 128
    %420 = vxpose.xlu0.b32.cont [14/16] 0.0, 128
    %421 = vxpose.xlu0.b32.cont [15/16] 0.0, 128
    %422 = vxpose.xlu0.b32.end [16/16] 0.0, 128
    %v423 = vpop.trf.xlu0
    %v424 = vpop.trf.xlu0
    %v425 = vpop.trf.xlu0
    %v426 = vpop.trf.xlu0
    %v427 = vpop.trf.xlu0
    %v428 = vpop.trf.xlu0
    %v429 = vpop.trf.xlu0
    %v430 = vpop.trf.xlu0
    %v431 = vpop.trf.xlu0
    %v432 = vpop.trf.xlu0
    %v433 = vpop.trf.xlu0
    %v434 = vpop.trf.xlu0
    %v435 = vpop.trf.xlu0
    %v436 = vpop.trf.xlu0
    %v437 = vpop.trf.xlu0
    %v438 = vpop.trf.xlu0
    %439 = vxpose.xlu0.b32.start [1/16] %v338, 128
    %440 = vxpose.xlu0.b32.cont [2/16] 0.0, 128
    %441 = vxpose.xlu0.b32.cont [3/16] 0.0, 128
    %442 = vxpose.xlu0.b32.cont [4/16] 0.0, 128
    %443 = vxpose.xlu0.b32.cont [5/16] 0.0, 128
    %444 = vxpose.xlu0.b32.cont [6/16] 0.0, 128
    %445 = vxpose.xlu0.b32.cont [7/16] 0.0, 128
    %446 = vxpose.xlu0.b32.cont [8/16] 0.0, 128
    %447 = vxpose.xlu0.b32.cont [9/16] 0.0, 128
    %448 = vxpose.xlu0.b32.cont [10/16] 0.0, 128
    %449 = vxpose.xlu0.b32.cont [11/16] 0.0, 128
    %450 = vxpose.xlu0.b32.cont [12/16] 0.0, 128
    %451 = vxpose.xlu0.b32.cont [13/16] 0.0, 128
    %452 = vxpose.xlu0.b32.cont [14/16] 0.0, 128
    %453 = vxpose.xlu0.b32.cont [15/16] 0.0, 128
    %454 = vxpose.xlu0.b32.end [16/16] 0.0, 128
    %v455 = vpop.trf.xlu0
    %v456 = vpop.trf.xlu0
    %v457 = vpop.trf.xlu0
    %v458 = vpop.trf.xlu0
    %v459 = vpop.trf.xlu0
    %v460 = vpop.trf.xlu0
    %v461 = vpop.trf.xlu0
    %v462 = vpop.trf.xlu0
    %v463 = vpop.trf.xlu0
    %v464 = vpop.trf.xlu0
    %v465 = vpop.trf.xlu0
    %v466 = vpop.trf.xlu0
    %v467 = vpop.trf.xlu0
    %v468 = vpop.trf.xlu0
    %v469 = vpop.trf.xlu0
    %v470 = vpop.trf.xlu0
    %471 = vxpose.xlu0.b32.start [1/16] %v340, 128
    %472 = vxpose.xlu0.b32.cont [2/16] 0.0, 128
    %473 = vxpose.xlu0.b32.cont [3/16] 0.0, 128
    %474 = vxpose.xlu0.b32.cont [4/16] 0.0, 128
    %475 = vxpose.xlu0.b32.cont [5/16] 0.0, 128
    %476 = vxpose.xlu0.b32.cont [6/16] 0.0, 128
    %477 = vxpose.xlu0.b32.cont [7/16] 0.0, 128
    %478 = vxpose.xlu0.b32.cont [8/16] 0.0, 128
    %479 = vxpose.xlu0.b32.cont [9/16] 0.0, 128
    %480 = vxpose.xlu0.b32.cont [10/16] 0.0, 128
    %481 = vxpose.xlu0.b32.cont [11/16] 0.0, 128
    %482 = vxpose.xlu0.b32.cont [12/16] 0.0, 128
    %483 = vxpose.xlu0.b32.cont [13/16] 0.0, 128
    %484 = vxpose.xlu0.b32.cont [14/16] 0.0, 128
    %485 = vxpose.xlu0.b32.cont [15/16] 0.0, 128
    %486 = vxpose.xlu0.b32.end [16/16] 0.0, 128
    %v487 = vpop.trf.xlu0
    %v488 = vpop.trf.xlu0
    %v489 = vpop.trf.xlu0
    %v490 = vpop.trf.xlu0
    %v491 = vpop.trf.xlu0
    %v492 = vpop.trf.xlu0
    %v493 = vpop.trf.xlu0
    %v494 = vpop.trf.xlu0
    %v495 = vpop.trf.xlu0
    %v496 = vpop.trf.xlu0
    %v497 = vpop.trf.xlu0
    %v498 = vpop.trf.xlu0
    %v499 = vpop.trf.xlu0
    %v500 = vpop.trf.xlu0
    %v501 = vpop.trf.xlu0
    %v502 = vpop.trf.xlu0
    %503 = vxpose.xlu0.b32.start [1/16] %v342, 128
    %504 = vxpose.xlu0.b32.cont [2/16] 0.0, 128
    %505 = vxpose.xlu0.b32.cont [3/16] 0.0, 128
    %506 = vxpose.xlu0.b32.cont [4/16] 0.0, 128
    %507 = vxpose.xlu0.b32.cont [5/16] 0.0, 128
    %508 = vxpose.xlu0.b32.cont [6/16] 0.0, 128
    %509 = vxpose.xlu0.b32.cont [7/16] 0.0, 128
    %510 = vxpose.xlu0.b32.cont [8/16] 0.0, 128
    %511 = vxpose.xlu0.b32.cont [9/16] 0.0, 128
    %512 = vxpose.xlu0.b32.cont [10/16] 0.0, 128
    %513 = vxpose.xlu0.b32.cont [11/16] 0.0, 128
    %514 = vxpose.xlu0.b32.cont [12/16] 0.0, 128
    %515 = vxpose.xlu0.b32.cont [13/16] 0.0, 128
    %516 = vxpose.xlu0.b32.cont [14/16] 0.0, 128
    %517 = vxpose.xlu0.b32.cont [15/16] 0.0, 128
    %518 = vxpose.xlu0.b32.end [16/16] 0.0, 128
    %v519 = vpop.trf.xlu0
    %v520 = vpop.trf.xlu0
    %v521 = vpop.trf.xlu0
    %v522 = vpop.trf.xlu0
    %v523 = vpop.trf.xlu0
    %v524 = vpop.trf.xlu0
    %v525 = vpop.trf.xlu0
    %v526 = vpop.trf.xlu0
    %v527 = vpop.trf.xlu0
    %v528 = vpop.trf.xlu0
    %v529 = vpop.trf.xlu0
    %v530 = vpop.trf.xlu0
    %v531 = vpop.trf.xlu0
    %v532 = vpop.trf.xlu0
    %v533 = vpop.trf.xlu0
    %v534 = vpop.trf.xlu0
    %541 = vrot.lane.b32.xlu0 %v359, 1
    %v542 = vpop.permute.xlu0 %541
    %543 = vrot.lane.b32.xlu0 %v391, 1
    %v544 = vpop.permute.xlu0 %543
    %545 = vrot.lane.b32.xlu0 %v423, 1
    %v546 = vpop.permute.xlu0 %545
    %547 = vrot.lane.b32.xlu0 %v455, 1
    %v548 = vpop.permute.xlu0 %547
    %549 = vrot.lane.b32.xlu0 %v487, 1
    %v550 = vpop.permute.xlu0 %549
    %551 = vrot.lane.b32.xlu0 %v519, 1
    %v552 = vpop.permute.xlu0 %551
    %vm559 = vcmask 72712
    %560 = vst.msk [vmem:[#allocation3 + $0x1] sm:$0xff] %vm559, %v542
    %561 = vst.msk [vmem:[#allocation3 + $0x11] sm:$0xff] %vm559, %v544
    %562 = vst.msk [vmem:[#allocation3 + $0x21] sm:$0xff] %vm559, %v546
    %563 = vst.msk [vmem:[#allocation3 + $0x31] sm:$0xff] %vm559, %v548
    %564 = vst.msk [vmem:[#allocation3 + $0x41] sm:$0xff] %vm559, %v550
    %565 = vst.msk [vmem:[#allocation3 + $0x51] sm:$0xff] %vm559, %v552
    %s566 = sld [smem:[#allocation13]]
    %s567 = sld [smem:[#allocation13 + $0x1]]
    %s568 = sld [smem:[#allocation13 + $0x2]]
    %s569 = sld [smem:[#allocation9]]
    %v570 = vld [vmem:[#allocation3] sm:$0xff]
    %v571 = vld [vmem:[#allocation3 + $0x8] sm:$0x1]
    %v572 = vld [vmem:[#allocation3 + $0x30] sm:$0xff]
    %v573 = vld [vmem:[#allocation3 + $0x38] sm:$0x1]
    %s574 = scalar_lea.vmem [#allocation3], 16
    %v575 = vld [vmem:[%s574] sm:$0xff]
    %v576 = vld [vmem:[%s574 + $0x8] sm:$0x1]
    %v577 = vld [vmem:[%s574 + $0x30] sm:$0xff]
    %v578 = vld [vmem:[%s574 + $0x38] sm:$0x1]
    %s579 = scalar_lea.vmem [#allocation3], 32
    %v580 = vld [vmem:[%s579] sm:$0xff]
    %v581 = vld [vmem:[%s579 + $0x8] sm:$0x1]
    %v582 = vld [vmem:[%s579 + $0x30] sm:$0xff]
    %v583 = vld [vmem:[%s579 + $0x38] sm:$0x1]
    %v584 = vstv %s566
    %v585 = vmul.f32 %v570, %v584
    %v586 = vmul.f32 %v571, %v584
    %v587 = vmul.f32 %v572, %v584
    %v588 = vmul.f32 %v573, %v584
    %v589 = vstv %s567
    %v590 = vmul.f32 %v575, %v589
    %v591 = vmul.f32 %v576, %v589
    %v592 = vmul.f32 %v577, %v589
    %v593 = vmul.f32 %v578, %v589
    %v594 = vadd.f32 %v585, %v590
    %v595 = vadd.f32 %v586, %v591
    %v596 = vadd.f32 %v587, %v592
    %v597 = vadd.f32 %v588, %v593
    %v598 = vstv %s568
    %v599 = vmul.f32 %v580, %v598
    %v600 = vmul.f32 %v581, %v598
    %v601 = vmul.f32 %v582, %v598
    %v602 = vmul.f32 %v583, %v598
    %v603 = vadd.f32 %v594, %v599
    %v604 = vadd.f32 %v595, %v600
    %v605 = vadd.f32 %v596, %v601
    %v606 = vadd.f32 %v597, %v602
    %v607 = vstv %s569
    %v608 = vadd.f32 %v603, %v607
    %v609 = vadd.f32 %v604, %v607
    %v610 = vadd.f32 %v605, %v607
    %v611 = vadd.f32 %v606, %v607
    %vm612 = vcmp.gt.f32.partialorder %v608, 0.0
    %vm613 = vcmp.gt.f32.partialorder %v609, 0.0
    %vm614 = vcmp.gt.f32.partialorder %v610, 0.0
    %vm615 = vcmp.gt.f32.partialorder %v611, 0.0
    %v616 = vmul.f32 %v608, 0.1
    %v617 = vmul.f32 %v609, 0.1
    %v618 = vmul.f32 %v610, 0.1
    %v619 = vmul.f32 %v611, 0.1
    %v620 = vsel %vm612, %v608, %v616
    %v621 = vsel %vm613, %v609, %v617
    %v622 = vsel %vm614, %v610, %v618
    %v623 = vsel %vm615, %v611, %v619
    %624 = vst.msk [vmem:[#allocation4] sm:$0xff] %vm100, %v620
    %625 = vst.msk [vmem:[#allocation4 + $0x8] sm:$0x1] %vm102, %v621
    %626 = vst.msk [vmem:[#allocation4 + $0x10] sm:$0xff] %vm100, %v622
    %627 = vst.msk [vmem:[#allocation4 + $0x18] sm:$0x1] %vm102, %v623
    %vm628 = vcmask 89088
    %629 = vst.msk [vmem:[#allocation5] sm:$0xff] %vm628, 0.0
    %vm630 = vcmask 83968
    %631 = vst.msk [vmem:[#allocation5 + $0x8] sm:$0x7] %vm630, 0.0
    %632 = vst.msk [vmem:[#allocation5 + $0x10] sm:$0xff] %vm628, 0.0
    %633 = vst.msk [vmem:[#allocation5 + $0x18] sm:$0x7] %vm630, 0.0
    %v634 = vld [vmem:[#allocation4] sm:$0xff]
    %v635 = vld [vmem:[#allocation4 + $0x8] sm:$0x1]
    %v636 = vld [vmem:[#allocation4 + $0x10] sm:$0xff]
    %v637 = vld [vmem:[#allocation4 + $0x18] sm:$0x1]
    %642 = vrot.lane.b32.xlu0 %v634, 1
    %v643 = vpop.permute.xlu0 %642
    %644 = vrot.lane.b32.xlu0 %v635, 1
    %v645 = vpop.permute.xlu0 %644
    %646 = vrot.lane.b32.xlu0 %v636, 1
    %v647 = vpop.permute.xlu0 %646
    %648 = vrot.lane.b32.xlu0 %v637, 1
    %v649 = vpop.permute.xlu0 %648
    %vm654 = vcmask 80904
    %655 = vst.msk [vmem:[#allocation5 + $0x1] sm:$0xff] %vm654, %v643
    %vm656 = vcmask 73736
    %657 = vst.msk [vmem:[#allocation5 + $0x9] sm:$0x1] %vm656, %v645
    %658 = vst.msk [vmem:[#allocation5 + $0x11] sm:$0xff] %vm654, %v647
    %659 = vst.msk [vmem:[#allocation5 + $0x19] sm:$0x1] %vm656, %v649
    %s660 = sld [smem:[#allocation14]]
    %s661 = sld [smem:[#allocation14 + $0x1]]
    %s662 = sld [smem:[#allocation14 + $0x2]]
    %s663 = sld [smem:[#allocation14 + $0x3]]
    %s664 = sld [smem:[#allocation14 + $0x4]]
    %s665 = sld [smem:[#allocation16]]
    %s666 = sld [smem:[#allocation16 + $0x1]]
    %s667 = sld [smem:[#allocation16 + $0x2]]
    %s668 = sld [smem:[#allocation16 + $0x3]]
    %s669 = sld [smem:[#allocation16 + $0x4]]
    %v670 = vld [vmem:[#allocation5] sm:$0xff]
    %v671 = vld [vmem:[#allocation5 + $0x8] sm:$0x7]
    %v672 = vld [vmem:[#allocation5 + $0x10] sm:$0xff]
    %v673 = vld [vmem:[#allocation5 + $0x18] sm:$0x7]
    %v674 = vstv %s660
    %v675 = vmul.f32 %v670, %v674
    %v676 = vmul.f32 %v671, %v674
    %v677 = vmul.f32 %v672, %v674
    %v678 = vmul.f32 %v673, %v674
    %v679 = vstv %s665
    %v680 = vadd.f32 %v675, %v679
    %v681 = vadd.f32 %v676, %v679
    %v682 = vadd.f32 %v677, %v679
    %v683 = vadd.f32 %v678, %v679
    %vm684 = vcmp.gt.f32.partialorder %v680, 0.0
    %vm685 = vcmp.gt.f32.partialorder %v681, 0.0
    %vm686 = vcmp.gt.f32.partialorder %v682, 0.0
    %vm687 = vcmp.gt.f32.partialorder %v683, 0.0
    %v688 = vmul.f32 %v680, 0.1
    %v689 = vmul.f32 %v681, 0.1
    %v690 = vmul.f32 %v682, 0.1
    %v691 = vmul.f32 %v683, 0.1
    %v692 = vsel %vm684, %v680, %v688
    %v693 = vsel %vm685, %v681, %v689
    %v694 = vsel %vm686, %v682, %v690
    %v695 = vsel %vm687, %v683, %v691
    %696 = vst.msk [vmem:[#allocation6] sm:$0xff] %vm628, %v692
    %697 = vst.msk [vmem:[#allocation6 + $0x8] sm:$0x7] %vm630, %v693
    %698 = vst.msk [vmem:[#allocation6 + $0x50] sm:$0xff] %vm628, %v694
    %699 = vst.msk [vmem:[#allocation6 + $0x58] sm:$0x7] %vm630, %v695
    %v700 = vstv %s661
    %v701 = vmul.f32 %v670, %v700
    %v702 = vmul.f32 %v671, %v700
    %v703 = vmul.f32 %v672, %v700
    %v704 = vmul.f32 %v673, %v700
    %v705 = vstv %s666
    %v706 = vadd.f32 %v701, %v705
    %v707 = vadd.f32 %v702, %v705
    %v708 = vadd.f32 %v703, %v705
    %v709 = vadd.f32 %v704, %v705
    %vm710 = vcmp.gt.f32.partialorder %v706, 0.0
    %vm711 = vcmp.gt.f32.partialorder %v707, 0.0
    %vm712 = vcmp.gt.f32.partialorder %v708, 0.0
    %vm713 = vcmp.gt.f32.partialorder %v709, 0.0
    %v714 = vmul.f32 %v706, 0.1
    %v715 = vmul.f32 %v707, 0.1
    %v716 = vmul.f32 %v708, 0.1
    %v717 = vmul.f32 %v709, 0.1
    %v718 = vsel %vm710, %v706, %v714
    %v719 = vsel %vm711, %v707, %v715
    %v720 = vsel %vm712, %v708, %v716
    %v721 = vsel %vm713, %v709, %v717
    %s722 = scalar_lea.vmem [#allocation6], 16
    %723 = vst.msk [vmem:[%s722] sm:$0xff] %vm628, %v718
    %724 = vst.msk [vmem:[%s722 + $0x8] sm:$0x7] %vm630, %v719
    %725 = vst.msk [vmem:[%s722 + $0x50] sm:$0xff] %vm628, %v720
    %726 = vst.msk [vmem:[%s722 + $0x58] sm:$0x7] %vm630, %v721
    %v727 = vstv %s662
    %v728 = vmul.f32 %v670, %v727
    %v729 = vmul.f32 %v671, %v727
    %v730 = vmul.f32 %v672, %v727
    %v731 = vmul.f32 %v673, %v727
    %v732 = vstv %s667
    %v733 = vadd.f32 %v728, %v732
    %v734 = vadd.f32 %v729, %v732
    %v735 = vadd.f32 %v730, %v732
    %v736 = vadd.f32 %v731, %v732
    %vm737 = vcmp.gt.f32.partialorder %v733, 0.0
    %vm738 = vcmp.gt.f32.partialorder %v734, 0.0
    %vm739 = vcmp.gt.f32.partialorder %v735, 0.0
    %vm740 = vcmp.gt.f32.partialorder %v736, 0.0
    %v741 = vmul.f32 %v733, 0.1
    %v742 = vmul.f32 %v734, 0.1
    %v743 = vmul.f32 %v735, 0.1
    %v744 = vmul.f32 %v736, 0.1
    %v745 = vsel %vm737, %v733, %v741
    %v746 = vsel %vm738, %v734, %v742
    %v747 = vsel %vm739, %v735, %v743
    %v748 = vsel %vm740, %v736, %v744
    %s749 = scalar_lea.vmem [#allocation6], 32
    %750 = vst.msk [vmem:[%s749] sm:$0xff] %vm628, %v745
    %751 = vst.msk [vmem:[%s749 + $0x8] sm:$0x7] %vm630, %v746
    %752 = vst.msk [vmem:[%s749 + $0x50] sm:$0xff] %vm628, %v747
    %753 = vst.msk [vmem:[%s749 + $0x58] sm:$0x7] %vm630, %v748
    %v754 = vstv %s663
    %v755 = vmul.f32 %v670, %v754
    %v756 = vmul.f32 %v671, %v754
    %v757 = vmul.f32 %v672, %v754
    %v758 = vmul.f32 %v673, %v754
    %v759 = vstv %s668
    %v760 = vadd.f32 %v755, %v759
    %v761 = vadd.f32 %v756, %v759
    %v762 = vadd.f32 %v757, %v759
    %v763 = vadd.f32 %v758, %v759
    %vm764 = vcmp.gt.f32.partialorder %v760, 0.0
    %vm765 = vcmp.gt.f32.partialorder %v761, 0.0
    %vm766 = vcmp.gt.f32.partialorder %v762, 0.0
    %vm767 = vcmp.gt.f32.partialorder %v763, 0.0
    %v768 = vmul.f32 %v760, 0.1
    %v769 = vmul.f32 %v761, 0.1
    %v770 = vmul.f32 %v762, 0.1
    %v771 = vmul.f32 %v763, 0.1
    %v772 = vsel %vm764, %v760, %v768
    %v773 = vsel %vm765, %v761, %v769
    %v774 = vsel %vm766, %v762, %v770
    %v775 = vsel %vm767, %v763, %v771
    %s776 = scalar_lea.vmem [#allocation6], 48
    %777 = vst.msk [vmem:[%s776] sm:$0xff] %vm628, %v772
    %778 = vst.msk [vmem:[%s776 + $0x8] sm:$0x7] %vm630, %v773
    %779 = vst.msk [vmem:[%s776 + $0x50] sm:$0xff] %vm628, %v774
    %780 = vst.msk [vmem:[%s776 + $0x58] sm:$0x7] %vm630, %v775
    %v781 = vstv %s664
    %v782 = vmul.f32 %v670, %v781
    %v783 = vmul.f32 %v671, %v781
    %v784 = vmul.f32 %v672, %v781
    %v785 = vmul.f32 %v673, %v781
    %v786 = vstv %s669
    %v787 = vadd.f32 %v782, %v786
    %v788 = vadd.f32 %v783, %v786
    %v789 = vadd.f32 %v784, %v786
    %v790 = vadd.f32 %v785, %v786
    %vm791 = vcmp.gt.f32.partialorder %v787, 0.0
    %vm792 = vcmp.gt.f32.partialorder %v788, 0.0
    %vm793 = vcmp.gt.f32.partialorder %v789, 0.0
    %vm794 = vcmp.gt.f32.partialorder %v790, 0.0
    %v795 = vmul.f32 %v787, 0.1
    %v796 = vmul.f32 %v788, 0.1
    %v797 = vmul.f32 %v789, 0.1
    %v798 = vmul.f32 %v790, 0.1
    %v799 = vsel %vm791, %v787, %v795
    %v800 = vsel %vm792, %v788, %v796
    %v801 = vsel %vm793, %v789, %v797
    %v802 = vsel %vm794, %v790, %v798
    %s803 = scalar_lea.vmem [#allocation6], 64
    %804 = vst.msk [vmem:[%s803] sm:$0xff] %vm628, %v799
    %805 = vst.msk [vmem:[%s803 + $0x8] sm:$0x7] %vm630, %v800
    %806 = vst.msk [vmem:[%s803 + $0x50] sm:$0xff] %vm628, %v801
    %807 = vst.msk [vmem:[%s803 + $0x58] sm:$0x7] %vm630, %v802
    %vm808 = vcmask 55296
    %809 = vst.msk [vmem:[#allocation8] sm:$0x7f] %vm808, 0.0
    %810 = vst.msk [vmem:[#allocation8 + $0x8] sm:$0x7f] %vm808, 0.0
    %811 = vst.msk [vmem:[#allocation8 + $0x10] sm:$0x7f] %vm808, 0.0
    %812 = vst.msk [vmem:[#allocation8 + $0x18] sm:$0x7f] %vm808, 0.0
    %813 = vst.msk [vmem:[#allocation8 + $0x20] sm:$0x7f] %vm808, 0.0
    %814 = vst.msk [vmem:[#allocation8 + $0x28] sm:$0x7f] %vm808, 0.0
    %815 = vst.msk [vmem:[#allocation8 + $0x30] sm:$0x7f] %vm808, 0.0
    %816 = vst.msk [vmem:[#allocation8 + $0x38] sm:$0x7f] %vm808, 0.0
    %817 = vst.msk [vmem:[#allocation8 + $0x40] sm:$0x7f] %vm808, 0.0
    %818 = vst.msk [vmem:[#allocation8 + $0x48] sm:$0x7f] %vm808, 0.0
    %s819 = scalar_lea.vmem [#allocation6], 1
    %v820 = vld [vmem:[%s819] ss:$2 sm:$0x1f]
    %s821 = scalar_lea.vmem [#allocation6], 17
    %v822 = vld [vmem:[%s821] ss:$2 sm:$0x1f]
    %s823 = scalar_lea.vmem [#allocation6], 33
    %v824 = vld [vmem:[%s823] ss:$2 sm:$0x1f]
    %s825 = scalar_lea.vmem [#allocation6], 49
    %v826 = vld [vmem:[%s825] ss:$2 sm:$0x1f]
    %s827 = scalar_lea.vmem [#allocation6], 65
    %v828 = vld [vmem:[%s827] ss:$2 sm:$0x1f]
    %s829 = scalar_lea.vmem [#allocation6], 81
    %v830 = vld [vmem:[%s829] ss:$2 sm:$0x1f]
    %s831 = scalar_lea.vmem [#allocation6], 97
    %v832 = vld [vmem:[%s831] ss:$2 sm:$0x1f]
    %s833 = scalar_lea.vmem [#allocation6], 113
    %v834 = vld [vmem:[%s833] ss:$2 sm:$0x1f]
    %s835 = scalar_lea.vmem [#allocation6], 129
    %v836 = vld [vmem:[%s835] ss:$2 sm:$0x1f]
    %s837 = scalar_lea.vmem [#allocation6], 145
    %v838 = vld [vmem:[%s837] ss:$2 sm:$0x1f]
    %839 = vxpose.xlu0.b32.start [1/16] %v820, 128
    %840 = vxpose.xlu0.b32.cont [2/16] 0.0, 128
    %841 = vxpose.xlu0.b32.cont [3/16] 0.0, 128
    %842 = vxpose.xlu0.b32.cont [4/16] 0.0, 128
    %843 = vxpose.xlu0.b32.cont [5/16] 0.0, 128
    %844 = vxpose.xlu0.b32.cont [6/16] 0.0, 128
    %845 = vxpose.xlu0.b32.cont [7/16] 0.0, 128
    %846 = vxpose.xlu0.b32.cont [8/16] 0.0, 128
    %847 = vxpose.xlu0.b32.cont [9/16] 0.0, 128
    %848 = vxpose.xlu0.b32.cont [10/16] 0.0, 128
    %849 = vxpose.xlu0.b32.cont [11/16] 0.0, 128
    %850 = vxpose.xlu0.b32.cont [12/16] 0.0, 128
    %851 = vxpose.xlu0.b32.cont [13/16] 0.0, 128
    %852 = vxpose.xlu0.b32.cont [14/16] 0.0, 128
    %853 = vxpose.xlu0.b32.cont [15/16] 0.0, 128
    %854 = vxpose.xlu0.b32.end [16/16] 0.0, 128
    %v855 = vpop.trf.xlu0
    %v856 = vpop.trf.xlu0
    %v857 = vpop.trf.xlu0
    %v858 = vpop.trf.xlu0
    %v859 = vpop.trf.xlu0
    %v860 = vpop.trf.xlu0
    %v861 = vpop.trf.xlu0
    %v862 = vpop.trf.xlu0
    %v863 = vpop.trf.xlu0
    %v864 = vpop.trf.xlu0
    %v865 = vpop.trf.xlu0
    %v866 = vpop.trf.xlu0
    %v867 = vpop.trf.xlu0
    %v868 = vpop.trf.xlu0
    %v869 = vpop.trf.xlu0
    %v870 = vpop.trf.xlu0
    %871 = vxpose.xlu0.b32.start [1/16] %v822, 128
    %872 = vxpose.xlu0.b32.cont [2/16] 0.0, 128
    %873 = vxpose.xlu0.b32.cont [3/16] 0.0, 128
    %874 = vxpose.xlu0.b32.cont [4/16] 0.0, 128
    %875 = vxpose.xlu0.b32.cont [5/16] 0.0, 128
    %876 = vxpose.xlu0.b32.cont [6/16] 0.0, 128
    %877 = vxpose.xlu0.b32.cont [7/16] 0.0, 128
    %878 = vxpose.xlu0.b32.cont [8/16] 0.0, 128
    %879 = vxpose.xlu0.b32.cont [9/16] 0.0, 128
    %880 = vxpose.xlu0.b32.cont [10/16] 0.0, 128
    %881 = vxpose.xlu0.b32.cont [11/16] 0.0, 128
    %882 = vxpose.xlu0.b32.cont [12/16] 0.0, 128
    %883 = vxpose.xlu0.b32.cont [13/16] 0.0, 128
    %884 = vxpose.xlu0.b32.cont [14/16] 0.0, 128
    %885 = vxpose.xlu0.b32.cont [15/16] 0.0, 128
    %886 = vxpose.xlu0.b32.end [16/16] 0.0, 128
    %v887 = vpop.trf.xlu0
    %v888 = vpop.trf.xlu0
    %v889 = vpop.trf.xlu0
    %v890 = vpop.trf.xlu0
    %v891 = vpop.trf.xlu0
    %v892 = vpop.trf.xlu0
    %v893 = vpop.trf.xlu0
    %v894 = vpop.trf.xlu0
    %v895 = vpop.trf.xlu0
    %v896 = vpop.trf.xlu0
    %v897 = vpop.trf.xlu0
    %v898 = vpop.trf.xlu0
    %v899 = vpop.trf.xlu0
    %v900 = vpop.trf.xlu0
    %v901 = vpop.trf.xlu0
    %v902 = vpop.trf.xlu0
    %903 = vxpose.xlu0.b32.start [1/16] %v824, 128
    %904 = vxpose.xlu0.b32.cont [2/16] 0.0, 128
    %905 = vxpose.xlu0.b32.cont [3/16] 0.0, 128
    %906 = vxpose.xlu0.b32.cont [4/16] 0.0, 128
    %907 = vxpose.xlu0.b32.cont [5/16] 0.0, 128
    %908 = vxpose.xlu0.b32.cont [6/16] 0.0, 128
    %909 = vxpose.xlu0.b32.cont [7/16] 0.0, 128
    %910 = vxpose.xlu0.b32.cont [8/16] 0.0, 128
    %911 = vxpose.xlu0.b32.cont [9/16] 0.0, 128
    %912 = vxpose.xlu0.b32.cont [10/16] 0.0, 128
    %913 = vxpose.xlu0.b32.cont [11/16] 0.0, 128
    %914 = vxpose.xlu0.b32.cont [12/16] 0.0, 128
    %915 = vxpose.xlu0.b32.cont [13/16] 0.0, 128
    %916 = vxpose.xlu0.b32.cont [14/16] 0.0, 128
    %917 = vxpose.xlu0.b32.cont [15/16] 0.0, 128
    %918 = vxpose.xlu0.b32.end [16/16] 0.0, 128
    %v919 = vpop.trf.xlu0
    %v920 = vpop.trf.xlu0
    %v921 = vpop.trf.xlu0
    %v922 = vpop.trf.xlu0
    %v923 = vpop.trf.xlu0
    %v924 = vpop.trf.xlu0
    %v925 = vpop.trf.xlu0
    %v926 = vpop.trf.xlu0
    %v927 = vpop.trf.xlu0
    %v928 = vpop.trf.xlu0
    %v929 = vpop.trf.xlu0
    %v930 = vpop.trf.xlu0
    %v931 = vpop.trf.xlu0
    %v932 = vpop.trf.xlu0
    %v933 = vpop.trf.xlu0
    %v934 = vpop.trf.xlu0
    %935 = vxpose.xlu0.b32.start [1/16] %v826, 128
    %936 = vxpose.xlu0.b32.cont [2/16] 0.0, 128
    %937 = vxpose.xlu0.b32.cont [3/16] 0.0, 128
    %938 = vxpose.xlu0.b32.cont [4/16] 0.0, 128
    %939 = vxpose.xlu0.b32.cont [5/16] 0.0, 128
    %940 = vxpose.xlu0.b32.cont [6/16] 0.0, 128
    %941 = vxpose.xlu0.b32.cont [7/16] 0.0, 128
    %942 = vxpose.xlu0.b32.cont [8/16] 0.0, 128
    %943 = vxpose.xlu0.b32.cont [9/16] 0.0, 128
    %944 = vxpose.xlu0.b32.cont [10/16] 0.0, 128
    %945 = vxpose.xlu0.b32.cont [11/16] 0.0, 128
    %946 = vxpose.xlu0.b32.cont [12/16] 0.0, 128
    %947 = vxpose.xlu0.b32.cont [13/16] 0.0, 128
    %948 = vxpose.xlu0.b32.cont [14/16] 0.0, 128
    %949 = vxpose.xlu0.b32.cont [15/16] 0.0, 128
    %950 = vxpose.xlu0.b32.end [16/16] 0.0, 128
    %v951 = vpop.trf.xlu0
    %v952 = vpop.trf.xlu0
    %v953 = vpop.trf.xlu0
    %v954 = vpop.trf.xlu0
    %v955 = vpop.trf.xlu0
    %v956 = vpop.trf.xlu0
    %v957 = vpop.trf.xlu0
    %v958 = vpop.trf.xlu0
    %v959 = vpop.trf.xlu0
    %v960 = vpop.trf.xlu0
    %v961 = vpop.trf.xlu0
    %v962 = vpop.trf.xlu0
    %v963 = vpop.trf.xlu0
    %v964 = vpop.trf.xlu0
    %v965 = vpop.trf.xlu0
    %v966 = vpop.trf.xlu0
    %967 = vxpose.xlu0.b32.start [1/16] %v828, 128
    %968 = vxpose.xlu0.b32.cont [2/16] 0.0, 128
    %969 = vxpose.xlu0.b32.cont [3/16] 0.0, 128
    %970 = vxpose.xlu0.b32.cont [4/16] 0.0, 128
    %971 = vxpose.xlu0.b32.cont [5/16] 0.0, 128
    %972 = vxpose.xlu0.b32.cont [6/16] 0.0, 128
    %973 = vxpose.xlu0.b32.cont [7/16] 0.0, 128
    %974 = vxpose.xlu0.b32.cont [8/16] 0.0, 128
    %975 = vxpose.xlu0.b32.cont [9/16] 0.0, 128
    %976 = vxpose.xlu0.b32.cont [10/16] 0.0, 128
    %977 = vxpose.xlu0.b32.cont [11/16] 0.0, 128
    %978 = vxpose.xlu0.b32.cont [12/16] 0.0, 128
    %979 = vxpose.xlu0.b32.cont [13/16] 0.0, 128
    %980 = vxpose.xlu0.b32.cont [14/16] 0.0, 128
    %981 = vxpose.xlu0.b32.cont [15/16] 0.0, 128
    %982 = vxpose.xlu0.b32.end [16/16] 0.0, 128
    %v983 = vpop.trf.xlu0
    %v984 = vpop.trf.xlu0
    %v985 = vpop.trf.xlu0
    %v986 = vpop.trf.xlu0
    %v987 = vpop.trf.xlu0
    %v988 = vpop.trf.xlu0
    %v989 = vpop.trf.xlu0
    %v990 = vpop.trf.xlu0
    %v991 = vpop.trf.xlu0
    %v992 = vpop.trf.xlu0
    %v993 = vpop.trf.xlu0
    %v994 = vpop.trf.xlu0
    %v995 = vpop.trf.xlu0
    %v996 = vpop.trf.xlu0
    %v997 = vpop.trf.xlu0
    %v998 = vpop.trf.xlu0
    %999 = vxpose.xlu0.b32.start [1/16] %v830, 128
    %1000 = vxpose.xlu0.b32.cont [2/16] 0.0, 128
    %1001 = vxpose.xlu0.b32.cont [3/16] 0.0, 128
    %1002 = vxpose.xlu0.b32.cont [4/16] 0.0, 128
    %1003 = vxpose.xlu0.b32.cont [5/16] 0.0, 128
    %1004 = vxpose.xlu0.b32.cont [6/16] 0.0, 128
    %1005 = vxpose.xlu0.b32.cont [7/16] 0.0, 128
    %1006 = vxpose.xlu0.b32.cont [8/16] 0.0, 128
    %1007 = vxpose.xlu0.b32.cont [9/16] 0.0, 128
    %1008 = vxpose.xlu0.b32.cont [10/16] 0.0, 128
    %1009 = vxpose.xlu0.b32.cont [11/16] 0.0, 128
    %1010 = vxpose.xlu0.b32.cont [12/16] 0.0, 128
    %1011 = vxpose.xlu0.b32.cont [13/16] 0.0, 128
    %1012 = vxpose.xlu0.b32.cont [14/16] 0.0, 128
    %1013 = vxpose.xlu0.b32.cont [15/16] 0.0, 128
    %1014 = vxpose.xlu0.b32.end [16/16] 0.0, 128
    %v1015 = vpop.trf.xlu0
    %v1016 = vpop.trf.xlu0
    %v1017 = vpop.trf.xlu0
    %v1018 = vpop.trf.xlu0
    %v1019 = vpop.trf.xlu0
    %v1020 = vpop.trf.xlu0
    %v1021 = vpop.trf.xlu0
    %v1022 = vpop.trf.xlu0
    %v1023 = vpop.trf.xlu0
    %v1024 = vpop.trf.xlu0
    %v1025 = vpop.trf.xlu0
    %v1026 = vpop.trf.xlu0
    %v1027 = vpop.trf.xlu0
    %v1028 = vpop.trf.xlu0
    %v1029 = vpop.trf.xlu0
    %v1030 = vpop.trf.xlu0
    %1031 = vxpose.xlu0.b32.start [1/16] %v832, 128
    %1032 = vxpose.xlu0.b32.cont [2/16] 0.0, 128
    %1033 = vxpose.xlu0.b32.cont [3/16] 0.0, 128
    %1034 = vxpose.xlu0.b32.cont [4/16] 0.0, 128
    %1035 = vxpose.xlu0.b32.cont [5/16] 0.0, 128
    %1036 = vxpose.xlu0.b32.cont [6/16] 0.0, 128
    %1037 = vxpose.xlu0.b32.cont [7/16] 0.0, 128
    %1038 = vxpose.xlu0.b32.cont [8/16] 0.0, 128
    %1039 = vxpose.xlu0.b32.cont [9/16] 0.0, 128
    %1040 = vxpose.xlu0.b32.cont [10/16] 0.0, 128
    %1041 = vxpose.xlu0.b32.cont [11/16] 0.0, 128
    %1042 = vxpose.xlu0.b32.cont [12/16] 0.0, 128
    %1043 = vxpose.xlu0.b32.cont [13/16] 0.0, 128
    %1044 = vxpose.xlu0.b32.cont [14/16] 0.0, 128
    %1045 = vxpose.xlu0.b32.cont [15/16] 0.0, 128
    %1046 = vxpose.xlu0.b32.end [16/16] 0.0, 128
    %v1047 = vpop.trf.xlu0
    %v1048 = vpop.trf.xlu0
    %v1049 = vpop.trf.xlu0
    %v1050 = vpop.trf.xlu0
    %v1051 = vpop.trf.xlu0
    %v1052 = vpop.trf.xlu0
    %v1053 = vpop.trf.xlu0
    %v1054 = vpop.trf.xlu0
    %v1055 = vpop.trf.xlu0
    %v1056 = vpop.trf.xlu0
    %v1057 = vpop.trf.xlu0
    %v1058 = vpop.trf.xlu0
    %v1059 = vpop.trf.xlu0
    %v1060 = vpop.trf.xlu0
    %v1061 = vpop.trf.xlu0
    %v1062 = vpop.trf.xlu0
    %1063 = vxpose.xlu0.b32.start [1/16] %v834, 128
    %1064 = vxpose.xlu0.b32.cont [2/16] 0.0, 128
    %1065 = vxpose.xlu0.b32.cont [3/16] 0.0, 128
    %1066 = vxpose.xlu0.b32.cont [4/16] 0.0, 128
    %1067 = vxpose.xlu0.b32.cont [5/16] 0.0, 128
    %1068 = vxpose.xlu0.b32.cont [6/16] 0.0, 128
    %1069 = vxpose.xlu0.b32.cont [7/16] 0.0, 128
    %1070 = vxpose.xlu0.b32.cont [8/16] 0.0, 128
    %1071 = vxpose.xlu0.b32.cont [9/16] 0.0, 128
    %1072 = vxpose.xlu0.b32.cont [10/16] 0.0, 128
    %1073 = vxpose.xlu0.b32.cont [11/16] 0.0, 128
    %1074 = vxpose.xlu0.b32.cont [12/16] 0.0, 128
    %1075 = vxpose.xlu0.b32.cont [13/16] 0.0, 128
    %1076 = vxpose.xlu0.b32.cont [14/16] 0.0, 128
    %1077 = vxpose.xlu0.b32.cont [15/16] 0.0, 128
    %1078 = vxpose.xlu0.b32.end [16/16] 0.0, 128
    %v1079 = vpop.trf.xlu0
    %v1080 = vpop.trf.xlu0
    %v1081 = vpop.trf.xlu0
    %v1082 = vpop.trf.xlu0
    %v1083 = vpop.trf.xlu0
    %v1084 = vpop.trf.xlu0
    %v1085 = vpop.trf.xlu0
    %v1086 = vpop.trf.xlu0
    %v1087 = vpop.trf.xlu0
    %v1088 = vpop.trf.xlu0
    %v1089 = vpop.trf.xlu0
    %v1090 = vpop.trf.xlu0
    %v1091 = vpop.trf.xlu0
    %v1092 = vpop.trf.xlu0
    %v1093 = vpop.trf.xlu0
    %v1094 = vpop.trf.xlu0
    %1095 = vxpose.xlu0.b32.start [1/16] %v836, 128
    %1096 = vxpose.xlu0.b32.cont [2/16] 0.0, 128
    %1097 = vxpose.xlu0.b32.cont [3/16] 0.0, 128
    %1098 = vxpose.xlu0.b32.cont [4/16] 0.0, 128
    %1099 = vxpose.xlu0.b32.cont [5/16] 0.0, 128
    %1100 = vxpose.xlu0.b32.cont [6/16] 0.0, 128
    %1101 = vxpose.xlu0.b32.cont [7/16] 0.0, 128
    %1102 = vxpose.xlu0.b32.cont [8/16] 0.0, 128
    %1103 = vxpose.xlu0.b32.cont [9/16] 0.0, 128
    %1104 = vxpose.xlu0.b32.cont [10/16] 0.0, 128
    %1105 = vxpose.xlu0.b32.cont [11/16] 0.0, 128
    %1106 = vxpose.xlu0.b32.cont [12/16] 0.0, 128
    %1107 = vxpose.xlu0.b32.cont [13/16] 0.0, 128
    %1108 = vxpose.xlu0.b32.cont [14/16] 0.0, 128
    %1109 = vxpose.xlu0.b32.cont [15/16] 0.0, 128
    %1110 = vxpose.xlu0.b32.end [16/16] 0.0, 128
    %v1111 = vpop.trf.xlu0
    %v1112 = vpop.trf.xlu0
    %v1113 = vpop.trf.xlu0
    %v1114 = vpop.trf.xlu0
    %v1115 = vpop.trf.xlu0
    %v1116 = vpop.trf.xlu0
    %v1117 = vpop.trf.xlu0
    %v1118 = vpop.trf.xlu0
    %v1119 = vpop.trf.xlu0
    %v1120 = vpop.trf.xlu0
    %v1121 = vpop.trf.xlu0
    %v1122 = vpop.trf.xlu0
    %v1123 = vpop.trf.xlu0
    %v1124 = vpop.trf.xlu0
    %v1125 = vpop.trf.xlu0
    %v1126 = vpop.trf.xlu0
    %1127 = vxpose.xlu0.b32.start [1/16] %v838, 128
    %1128 = vxpose.xlu0.b32.cont [2/16] 0.0, 128
    %1129 = vxpose.xlu0.b32.cont [3/16] 0.0, 128
    %1130 = vxpose.xlu0.b32.cont [4/16] 0.0, 128
    %1131 = vxpose.xlu0.b32.cont [5/16] 0.0, 128
    %1132 = vxpose.xlu0.b32.cont [6/16] 0.0, 128
    %1133 = vxpose.xlu0.b32.cont [7/16] 0.0, 128
    %1134 = vxpose.xlu0.b32.cont [8/16] 0.0, 128
    %1135 = vxpose.xlu0.b32.cont [9/16] 0.0, 128
    %1136 = vxpose.xlu0.b32.cont [10/16] 0.0, 128
    %1137 = vxpose.xlu0.b32.cont [11/16] 0.0, 128
    %1138 = vxpose.xlu0.b32.cont [12/16] 0.0, 128
    %1139 = vxpose.xlu0.b32.cont [13/16] 0.0, 128
    %1140 = vxpose.xlu0.b32.cont [14/16] 0.0, 128
    %1141 = vxpose.xlu0.b32.cont [15/16] 0.0, 128
    %1142 = vxpose.xlu0.b32.end [16/16] 0.0, 128
    %v1143 = vpop.trf.xlu0
    %v1144 = vpop.trf.xlu0
    %v1145 = vpop.trf.xlu0
    %v1146 = vpop.trf.xlu0
    %v1147 = vpop.trf.xlu0
    %v1148 = vpop.trf.xlu0
    %v1149 = vpop.trf.xlu0
    %v1150 = vpop.trf.xlu0
    %v1151 = vpop.trf.xlu0
    %v1152 = vpop.trf.xlu0
    %v1153 = vpop.trf.xlu0
    %v1154 = vpop.trf.xlu0
    %v1155 = vpop.trf.xlu0
    %v1156 = vpop.trf.xlu0
    %v1157 = vpop.trf.xlu0
    %v1158 = vpop.trf.xlu0
    %vm1159 = vcmask 39936
    %1160 = vst.msk [vmem:[#allocation7] sm:$0xff] %vm1159, %v855
    %vm1161 = vcmask 34816
    %1162 = vst.msk [vmem:[#allocation7 + $0x8] sm:$0x7] %vm1161, %v856
    %1163 = vst.msk [vmem:[#allocation7 + $0x10] sm:$0xff] %vm1159, %v887
    %1164 = vst.msk [vmem:[#allocation7 + $0x18] sm:$0x7] %vm1161, %v888
    %1165 = vst.msk [vmem:[#allocation7 + $0x20] sm:$0xff] %vm1159, %v919
    %1166 = vst.msk [vmem:[#allocation7 + $0x28] sm:$0x7] %vm1161, %v920
    %1167 = vst.msk [vmem:[#allocation7 + $0x30] sm:$0xff] %vm1159, %v951
    %1168 = vst.msk [vmem:[#allocation7 + $0x38] sm:$0x7] %vm1161, %v952
    %1169 = vst.msk [vmem:[#allocation7 + $0x40] sm:$0xff] %vm1159, %v983
    %1170 = vst.msk [vmem:[#allocation7 + $0x48] sm:$0x7] %vm1161, %v984
    %1171 = vst.msk [vmem:[#allocation7 + $0x50] sm:$0xff] %vm1159, %v1015
    %1172 = vst.msk [vmem:[#allocation7 + $0x58] sm:$0x7] %vm1161, %v1016
    %1173 = vst.msk [vmem:[#allocation7 + $0x60] sm:$0xff] %vm1159, %v1047
    %1174 = vst.msk [vmem:[#allocation7 + $0x68] sm:$0x7] %vm1161, %v1048
    %1175 = vst.msk [vmem:[#allocation7 + $0x70] sm:$0xff] %vm1159, %v1079
    %1176 = vst.msk [vmem:[#allocation7 + $0x78] sm:$0x7] %vm1161, %v1080
    %1177 = vst.msk [vmem:[#allocation7 + $0x80] sm:$0xff] %vm1159, %v1111
    %1178 = vst.msk [vmem:[#allocation7 + $0x88] sm:$0x7] %vm1161, %v1112
    %1179 = vst.msk [vmem:[#allocation7 + $0x90] sm:$0xff] %vm1159, %v1143
    %1180 = vst.msk [vmem:[#allocation7 + $0x98] sm:$0x7] %vm1161, %v1144
    %s1181 = scalar_lea.vmem [#allocation7], 1
    %v1182 = vld [vmem:[%s1181] ss:$2 sm:$0x1f]
    %s1183 = scalar_lea.vmem [#allocation7], 17
    %v1184 = vld [vmem:[%s1183] ss:$2 sm:$0x1f]
    %s1185 = scalar_lea.vmem [#allocation7], 33
    %v1186 = vld [vmem:[%s1185] ss:$2 sm:$0x1f]
    %s1187 = scalar_lea.vmem [#allocation7], 49
    %v1188 = vld [vmem:[%s1187] ss:$2 sm:$0x1f]
    %s1189 = scalar_lea.vmem [#allocation7], 65
    %v1190 = vld [vmem:[%s1189] ss:$2 sm:$0x1f]
    %s1191 = scalar_lea.vmem [#allocation7], 81
    %v1192 = vld [vmem:[%s1191] ss:$2 sm:$0x1f]
    %s1193 = scalar_lea.vmem [#allocation7], 97
    %v1194 = vld [vmem:[%s1193] ss:$2 sm:$0x1f]
    %s1195 = scalar_lea.vmem [#allocation7], 113
    %v1196 = vld [vmem:[%s1195] ss:$2 sm:$0x1f]
    %s1197 = scalar_lea.vmem [#allocation7], 129
    %v1198 = vld [vmem:[%s1197] ss:$2 sm:$0x1f]
    %s1199 = scalar_lea.vmem [#allocation7], 145
    %v1200 = vld [vmem:[%s1199] ss:$2 sm:$0x1f]
    %1201 = vxpose.xlu0.b32.start [1/16] %v1182, 128
    %1202 = vxpose.xlu0.b32.cont [2/16] 0.0, 128
    %1203 = vxpose.xlu0.b32.cont [3/16] 0.0, 128
    %1204 = vxpose.xlu0.b32.cont [4/16] 0.0, 128
    %1205 = vxpose.xlu0.b32.cont [5/16] 0.0, 128
    %1206 = vxpose.xlu0.b32.cont [6/16] 0.0, 128
    %1207 = vxpose.xlu0.b32.cont [7/16] 0.0, 128
    %1208 = vxpose.xlu0.b32.cont [8/16] 0.0, 128
    %1209 = vxpose.xlu0.b32.cont [9/16] 0.0, 128
    %1210 = vxpose.xlu0.b32.cont [10/16] 0.0, 128
    %1211 = vxpose.xlu0.b32.cont [11/16] 0.0, 128
    %1212 = vxpose.xlu0.b32.cont [12/16] 0.0, 128
    %1213 = vxpose.xlu0.b32.cont [13/16] 0.0, 128
    %1214 = vxpose.xlu0.b32.cont [14/16] 0.0, 128
    %1215 = vxpose.xlu0.b32.cont [15/16] 0.0, 128
    %1216 = vxpose.xlu0.b32.end [16/16] 0.0, 128
    %v1217 = vpop.trf.xlu0
    %v1218 = vpop.trf.xlu0
    %v1219 = vpop.trf.xlu0
    %v1220 = vpop.trf.xlu0
    %v1221 = vpop.trf.xlu0
    %v1222 = vpop.trf.xlu0
    %v1223 = vpop.trf.xlu0
    %v1224 = vpop.trf.xlu0
    %v1225 = vpop.trf.xlu0
    %v1226 = vpop.trf.xlu0
    %v1227 = vpop.trf.xlu0
    %v1228 = vpop.trf.xlu0
    %v1229 = vpop.trf.xlu0
    %v1230 = vpop.trf.xlu0
    %v1231 = vpop.trf.xlu0
    %v1232 = vpop.trf.xlu0
    %1233 = vxpose.xlu0.b32.start [1/16] %v1184, 128
    %1234 = vxpose.xlu0.b32.cont [2/16] 0.0, 128
    %1235 = vxpose.xlu0.b32.cont [3/16] 0.0, 128
    %1236 = vxpose.xlu0.b32.cont [4/16] 0.0, 128
    %1237 = vxpose.xlu0.b32.cont [5/16] 0.0, 128
    %1238 = vxpose.xlu0.b32.cont [6/16] 0.0, 128
    %1239 = vxpose.xlu0.b32.cont [7/16] 0.0, 128
    %1240 = vxpose.xlu0.b32.cont [8/16] 0.0, 128
    %1241 = vxpose.xlu0.b32.cont [9/16] 0.0, 128
    %1242 = vxpose.xlu0.b32.cont [10/16] 0.0, 128
    %1243 = vxpose.xlu0.b32.cont [11/16] 0.0, 128
    %1244 = vxpose.xlu0.b32.cont [12/16] 0.0, 128
    %1245 = vxpose.xlu0.b32.cont [13/16] 0.0, 128
    %1246 = vxpose.xlu0.b32.cont [14/16] 0.0, 128
    %1247 = vxpose.xlu0.b32.cont [15/16] 0.0, 128
    %1248 = vxpose.xlu0.b32.end [16/16] 0.0, 128
    %v1249 = vpop.trf.xlu0
    %v1250 = vpop.trf.xlu0
    %v1251 = vpop.trf.xlu0
    %v1252 = vpop.trf.xlu0
    %v1253 = vpop.trf.xlu0
    %v1254 = vpop.trf.xlu0
    %v1255 = vpop.trf.xlu0
    %v1256 = vpop.trf.xlu0
    %v1257 = vpop.trf.xlu0
    %v1258 = vpop.trf.xlu0
    %v1259 = vpop.trf.xlu0
    %v1260 = vpop.trf.xlu0
    %v1261 = vpop.trf.xlu0
    %v1262 = vpop.trf.xlu0
    %v1263 = vpop.trf.xlu0
    %v1264 = vpop.trf.xlu0
    %1265 = vxpose.xlu0.b32.start [1/16] %v1186, 128
    %1266 = vxpose.xlu0.b32.cont [2/16] 0.0, 128
    %1267 = vxpose.xlu0.b32.cont [3/16] 0.0, 128
    %1268 = vxpose.xlu0.b32.cont [4/16] 0.0, 128
    %1269 = vxpose.xlu0.b32.cont [5/16] 0.0, 128
    %1270 = vxpose.xlu0.b32.cont [6/16] 0.0, 128
    %1271 = vxpose.xlu0.b32.cont [7/16] 0.0, 128
    %1272 = vxpose.xlu0.b32.cont [8/16] 0.0, 128
    %1273 = vxpose.xlu0.b32.cont [9/16] 0.0, 128
    %1274 = vxpose.xlu0.b32.cont [10/16] 0.0, 128
    %1275 = vxpose.xlu0.b32.cont [11/16] 0.0, 128
    %1276 = vxpose.xlu0.b32.cont [12/16] 0.0, 128
    %1277 = vxpose.xlu0.b32.cont [13/16] 0.0, 128
    %1278 = vxpose.xlu0.b32.cont [14/16] 0.0, 128
    %1279 = vxpose.xlu0.b32.cont [15/16] 0.0, 128
    %1280 = vxpose.xlu0.b32.end [16/16] 0.0, 128
    %v1281 = vpop.trf.xlu0
    %v1282 = vpop.trf.xlu0
    %v1283 = vpop.trf.xlu0
    %v1284 = vpop.trf.xlu0
    %v1285 = vpop.trf.xlu0
    %v1286 = vpop.trf.xlu0
    %v1287 = vpop.trf.xlu0
    %v1288 = vpop.trf.xlu0
    %v1289 = vpop.trf.xlu0
    %v1290 = vpop.trf.xlu0
    %v1291 = vpop.trf.xlu0
    %v1292 = vpop.trf.xlu0
    %v1293 = vpop.trf.xlu0
    %v1294 = vpop.trf.xlu0
    %v1295 = vpop.trf.xlu0
    %v1296 = vpop.trf.xlu0
    %1297 = vxpose.xlu0.b32.start [1/16] %v1188, 128
    %1298 = vxpose.xlu0.b32.cont [2/16] 0.0, 128
    %1299 = vxpose.xlu0.b32.cont [3/16] 0.0, 128
    %1300 = vxpose.xlu0.b32.cont [4/16] 0.0, 128
    %1301 = vxpose.xlu0.b32.cont [5/16] 0.0, 128
    %1302 = vxpose.xlu0.b32.cont [6/16] 0.0, 128
    %1303 = vxpose.xlu0.b32.cont [7/16] 0.0, 128
    %1304 = vxpose.xlu0.b32.cont [8/16] 0.0, 128
    %1305 = vxpose.xlu0.b32.cont [9/16] 0.0, 128
    %1306 = vxpose.xlu0.b32.cont [10/16] 0.0, 128
    %1307 = vxpose.xlu0.b32.cont [11/16] 0.0, 128
    %1308 = vxpose.xlu0.b32.cont [12/16] 0.0, 128
    %1309 = vxpose.xlu0.b32.cont [13/16] 0.0, 128
    %1310 = vxpose.xlu0.b32.cont [14/16] 0.0, 128
    %1311 = vxpose.xlu0.b32.cont [15/16] 0.0, 128
    %1312 = vxpose.xlu0.b32.end [16/16] 0.0, 128
    %v1313 = vpop.trf.xlu0
    %v1314 = vpop.trf.xlu0
    %v1315 = vpop.trf.xlu0
    %v1316 = vpop.trf.xlu0
    %v1317 = vpop.trf.xlu0
    %v1318 = vpop.trf.xlu0
    %v1319 = vpop.trf.xlu0
    %v1320 = vpop.trf.xlu0
    %v1321 = vpop.trf.xlu0
    %v1322 = vpop.trf.xlu0
    %v1323 = vpop.trf.xlu0
    %v1324 = vpop.trf.xlu0
    %v1325 = vpop.trf.xlu0
    %v1326 = vpop.trf.xlu0
    %v1327 = vpop.trf.xlu0
    %v1328 = vpop.trf.xlu0
    %1329 = vxpose.xlu0.b32.start [1/16] %v1190, 128
    %1330 = vxpose.xlu0.b32.cont [2/16] 0.0, 128
    %1331 = vxpose.xlu0.b32.cont [3/16] 0.0, 128
    %1332 = vxpose.xlu0.b32.cont [4/16] 0.0, 128
    %1333 = vxpose.xlu0.b32.cont [5/16] 0.0, 128
    %1334 = vxpose.xlu0.b32.cont [6/16] 0.0, 128
    %1335 = vxpose.xlu0.b32.cont [7/16] 0.0, 128
    %1336 = vxpose.xlu0.b32.cont [8/16] 0.0, 128
    %1337 = vxpose.xlu0.b32.cont [9/16] 0.0, 128
    %1338 = vxpose.xlu0.b32.cont [10/16] 0.0, 128
    %1339 = vxpose.xlu0.b32.cont [11/16] 0.0, 128
    %1340 = vxpose.xlu0.b32.cont [12/16] 0.0, 128
    %1341 = vxpose.xlu0.b32.cont [13/16] 0.0, 128
    %1342 = vxpose.xlu0.b32.cont [14/16] 0.0, 128
    %1343 = vxpose.xlu0.b32.cont [15/16] 0.0, 128
    %1344 = vxpose.xlu0.b32.end [16/16] 0.0, 128
    %v1345 = vpop.trf.xlu0
    %v1346 = vpop.trf.xlu0
    %v1347 = vpop.trf.xlu0
    %v1348 = vpop.trf.xlu0
    %v1349 = vpop.trf.xlu0
    %v1350 = vpop.trf.xlu0
    %v1351 = vpop.trf.xlu0
    %v1352 = vpop.trf.xlu0
    %v1353 = vpop.trf.xlu0
    %v1354 = vpop.trf.xlu0
    %v1355 = vpop.trf.xlu0
    %v1356 = vpop.trf.xlu0
    %v1357 = vpop.trf.xlu0
    %v1358 = vpop.trf.xlu0
    %v1359 = vpop.trf.xlu0
    %v1360 = vpop.trf.xlu0
    %1361 = vxpose.xlu0.b32.start [1/16] %v1192, 128
    %1362 = vxpose.xlu0.b32.cont [2/16] 0.0, 128
    %1363 = vxpose.xlu0.b32.cont [3/16] 0.0, 128
    %1364 = vxpose.xlu0.b32.cont [4/16] 0.0, 128
    %1365 = vxpose.xlu0.b32.cont [5/16] 0.0, 128
    %1366 = vxpose.xlu0.b32.cont [6/16] 0.0, 128
    %1367 = vxpose.xlu0.b32.cont [7/16] 0.0, 128
    %1368 = vxpose.xlu0.b32.cont [8/16] 0.0, 128
    %1369 = vxpose.xlu0.b32.cont [9/16] 0.0, 128
    %1370 = vxpose.xlu0.b32.cont [10/16] 0.0, 128
    %1371 = vxpose.xlu0.b32.cont [11/16] 0.0, 128
    %1372 = vxpose.xlu0.b32.cont [12/16] 0.0, 128
    %1373 = vxpose.xlu0.b32.cont [13/16] 0.0, 128
    %1374 = vxpose.xlu0.b32.cont [14/16] 0.0, 128
    %1375 = vxpose.xlu0.b32.cont [15/16] 0.0, 128
    %1376 = vxpose.xlu0.b32.end [16/16] 0.0, 128
    %v1377 = vpop.trf.xlu0
    %v1378 = vpop.trf.xlu0
    %v1379 = vpop.trf.xlu0
    %v1380 = vpop.trf.xlu0
    %v1381 = vpop.trf.xlu0
    %v1382 = vpop.trf.xlu0
    %v1383 = vpop.trf.xlu0
    %v1384 = vpop.trf.xlu0
    %v1385 = vpop.trf.xlu0
    %v1386 = vpop.trf.xlu0
    %v1387 = vpop.trf.xlu0
    %v1388 = vpop.trf.xlu0
    %v1389 = vpop.trf.xlu0
    %v1390 = vpop.trf.xlu0
    %v1391 = vpop.trf.xlu0
    %v1392 = vpop.trf.xlu0
    %1393 = vxpose.xlu0.b32.start [1/16] %v1194, 128
    %1394 = vxpose.xlu0.b32.cont [2/16] 0.0, 128
    %1395 = vxpose.xlu0.b32.cont [3/16] 0.0, 128
    %1396 = vxpose.xlu0.b32.cont [4/16] 0.0, 128
    %1397 = vxpose.xlu0.b32.cont [5/16] 0.0, 128
    %1398 = vxpose.xlu0.b32.cont [6/16] 0.0, 128
    %1399 = vxpose.xlu0.b32.cont [7/16] 0.0, 128
    %1400 = vxpose.xlu0.b32.cont [8/16] 0.0, 128
    %1401 = vxpose.xlu0.b32.cont [9/16] 0.0, 128
    %1402 = vxpose.xlu0.b32.cont [10/16] 0.0, 128
    %1403 = vxpose.xlu0.b32.cont [11/16] 0.0, 128
    %1404 = vxpose.xlu0.b32.cont [12/16] 0.0, 128
    %1405 = vxpose.xlu0.b32.cont [13/16] 0.0, 128
    %1406 = vxpose.xlu0.b32.cont [14/16] 0.0, 128
    %1407 = vxpose.xlu0.b32.cont [15/16] 0.0, 128
    %1408 = vxpose.xlu0.b32.end [16/16] 0.0, 128
    %v1409 = vpop.trf.xlu0
    %v1410 = vpop.trf.xlu0
    %v1411 = vpop.trf.xlu0
    %v1412 = vpop.trf.xlu0
    %v1413 = vpop.trf.xlu0
    %v1414 = vpop.trf.xlu0
    %v1415 = vpop.trf.xlu0
    %v1416 = vpop.trf.xlu0
    %v1417 = vpop.trf.xlu0
    %v1418 = vpop.trf.xlu0
    %v1419 = vpop.trf.xlu0
    %v1420 = vpop.trf.xlu0
    %v1421 = vpop.trf.xlu0
    %v1422 = vpop.trf.xlu0
    %v1423 = vpop.trf.xlu0
    %v1424 = vpop.trf.xlu0
    %1425 = vxpose.xlu0.b32.start [1/16] %v1196, 128
    %1426 = vxpose.xlu0.b32.cont [2/16] 0.0, 128
    %1427 = vxpose.xlu0.b32.cont [3/16] 0.0, 128
    %1428 = vxpose.xlu0.b32.cont [4/16] 0.0, 128
    %1429 = vxpose.xlu0.b32.cont [5/16] 0.0, 128
    %1430 = vxpose.xlu0.b32.cont [6/16] 0.0, 128
    %1431 = vxpose.xlu0.b32.cont [7/16] 0.0, 128
    %1432 = vxpose.xlu0.b32.cont [8/16] 0.0, 128
    %1433 = vxpose.xlu0.b32.cont [9/16] 0.0, 128
    %1434 = vxpose.xlu0.b32.cont [10/16] 0.0, 128
    %1435 = vxpose.xlu0.b32.cont [11/16] 0.0, 128
    %1436 = vxpose.xlu0.b32.cont [12/16] 0.0, 128
    %1437 = vxpose.xlu0.b32.cont [13/16] 0.0, 128
    %1438 = vxpose.xlu0.b32.cont [14/16] 0.0, 128
    %1439 = vxpose.xlu0.b32.cont [15/16] 0.0, 128
    %1440 = vxpose.xlu0.b32.end [16/16] 0.0, 128
    %v1441 = vpop.trf.xlu0
    %v1442 = vpop.trf.xlu0
    %v1443 = vpop.trf.xlu0
    %v1444 = vpop.trf.xlu0
    %v1445 = vpop.trf.xlu0
    %v1446 = vpop.trf.xlu0
    %v1447 = vpop.trf.xlu0
    %v1448 = vpop.trf.xlu0
    %v1449 = vpop.trf.xlu0
    %v1450 = vpop.trf.xlu0
    %v1451 = vpop.trf.xlu0
    %v1452 = vpop.trf.xlu0
    %v1453 = vpop.trf.xlu0
    %v1454 = vpop.trf.xlu0
    %v1455 = vpop.trf.xlu0
    %v1456 = vpop.trf.xlu0
    %1457 = vxpose.xlu0.b32.start [1/16] %v1198, 128
    %1458 = vxpose.xlu0.b32.cont [2/16] 0.0, 128
    %1459 = vxpose.xlu0.b32.cont [3/16] 0.0, 128
    %1460 = vxpose.xlu0.b32.cont [4/16] 0.0, 128
    %1461 = vxpose.xlu0.b32.cont [5/16] 0.0, 128
    %1462 = vxpose.xlu0.b32.cont [6/16] 0.0, 128
    %1463 = vxpose.xlu0.b32.cont [7/16] 0.0, 128
    %1464 = vxpose.xlu0.b32.cont [8/16] 0.0, 128
    %1465 = vxpose.xlu0.b32.cont [9/16] 0.0, 128
    %1466 = vxpose.xlu0.b32.cont [10/16] 0.0, 128
    %1467 = vxpose.xlu0.b32.cont [11/16] 0.0, 128
    %1468 = vxpose.xlu0.b32.cont [12/16] 0.0, 128
    %1469 = vxpose.xlu0.b32.cont [13/16] 0.0, 128
    %1470 = vxpose.xlu0.b32.cont [14/16] 0.0, 128
    %1471 = vxpose.xlu0.b32.cont [15/16] 0.0, 128
    %1472 = vxpose.xlu0.b32.end [16/16] 0.0, 128
    %v1473 = vpop.trf.xlu0
    %v1474 = vpop.trf.xlu0
    %v1475 = vpop.trf.xlu0
    %v1476 = vpop.trf.xlu0
    %v1477 = vpop.trf.xlu0
    %v1478 = vpop.trf.xlu0
    %v1479 = vpop.trf.xlu0
    %v1480 = vpop.trf.xlu0
    %v1481 = vpop.trf.xlu0
    %v1482 = vpop.trf.xlu0
    %v1483 = vpop.trf.xlu0
    %v1484 = vpop.trf.xlu0
    %v1485 = vpop.trf.xlu0
    %v1486 = vpop.trf.xlu0
    %v1487 = vpop.trf.xlu0
    %v1488 = vpop.trf.xlu0
    %1489 = vxpose.xlu0.b32.start [1/16] %v1200, 128
    %1490 = vxpose.xlu0.b32.cont [2/16] 0.0, 128
    %1491 = vxpose.xlu0.b32.cont [3/16] 0.0, 128
    %1492 = vxpose.xlu0.b32.cont [4/16] 0.0, 128
    %1493 = vxpose.xlu0.b32.cont [5/16] 0.0, 128
    %1494 = vxpose.xlu0.b32.cont [6/16] 0.0, 128
    %1495 = vxpose.xlu0.b32.cont [7/16] 0.0, 128
    %1496 = vxpose.xlu0.b32.cont [8/16] 0.0, 128
    %1497 = vxpose.xlu0.b32.cont [9/16] 0.0, 128
    %1498 = vxpose.xlu0.b32.cont [10/16] 0.0, 128
    %1499 = vxpose.xlu0.b32.cont [11/16] 0.0, 128
    %1500 = vxpose.xlu0.b32.cont [12/16] 0.0, 128
    %1501 = vxpose.xlu0.b32.cont [13/16] 0.0, 128
    %1502 = vxpose.xlu0.b32.cont [14/16] 0.0, 128
    %1503 = vxpose.xlu0.b32.cont [15/16] 0.0, 128
    %1504 = vxpose.xlu0.b32.end [16/16] 0.0, 128
    %v1505 = vpop.trf.xlu0
    %v1506 = vpop.trf.xlu0
    %v1507 = vpop.trf.xlu0
    %v1508 = vpop.trf.xlu0
    %v1509 = vpop.trf.xlu0
    %v1510 = vpop.trf.xlu0
    %v1511 = vpop.trf.xlu0
    %v1512 = vpop.trf.xlu0
    %v1513 = vpop.trf.xlu0
    %v1514 = vpop.trf.xlu0
    %v1515 = vpop.trf.xlu0
    %v1516 = vpop.trf.xlu0
    %v1517 = vpop.trf.xlu0
    %v1518 = vpop.trf.xlu0
    %v1519 = vpop.trf.xlu0
    %v1520 = vpop.trf.xlu0
    %1531 = vrot.lane.b32.xlu0 %v1217, 1
    %v1532 = vpop.permute.xlu0 %1531
    %1533 = vrot.lane.b32.xlu0 %v1249, 1
    %v1534 = vpop.permute.xlu0 %1533
    %1535 = vrot.lane.b32.xlu0 %v1281, 1
    %v1536 = vpop.permute.xlu0 %1535
    %1537 = vrot.lane.b32.xlu0 %v1313, 1
    %v1538 = vpop.permute.xlu0 %1537
    %1539 = vrot.lane.b32.xlu0 %v1345, 1
    %v1540 = vpop.permute.xlu0 %1539
    %1541 = vrot.lane.b32.xlu0 %v1377, 1
    %v1542 = vpop.permute.xlu0 %1541
    %1543 = vrot.lane.b32.xlu0 %v1409, 1
    %v1544 = vpop.permute.xlu0 %1543
    %1545 = vrot.lane.b32.xlu0 %v1441, 1
    %v1546 = vpop.permute.xlu0 %1545
    %1547 = vrot.lane.b32.xlu0 %v1473, 1
    %v1548 = vpop.permute.xlu0 %1547
    %1549 = vrot.lane.b32.xlu0 %v1505, 1
    %v1550 = vpop.permute.xlu0 %1549
    %vm1561 = vcmask 45064
    %1562 = vst.msk [vmem:[#allocation8 + $0x1] sm:$0x1f] %vm1561, %v1532
    %1563 = vst.msk [vmem:[#allocation8 + $0x9] sm:$0x1f] %vm1561, %v1534
    %1564 = vst.msk [vmem:[#allocation8 + $0x11] sm:$0x1f] %vm1561, %v1536
    %1565 = vst.msk [vmem:[#allocation8 + $0x19] sm:$0x1f] %vm1561, %v1538
    %1566 = vst.msk [vmem:[#allocation8 + $0x21] sm:$0x1f] %vm1561, %v1540
    %1567 = vst.msk [vmem:[#allocation8 + $0x29] sm:$0x1f] %vm1561, %v1542
    %1568 = vst.msk [vmem:[#allocation8 + $0x31] sm:$0x1f] %vm1561, %v1544
    %1569 = vst.msk [vmem:[#allocation8 + $0x39] sm:$0x1f] %vm1561, %v1546
    %1570 = vst.msk [vmem:[#allocation8 + $0x41] sm:$0x1f] %vm1561, %v1548
    %1571 = vst.msk [vmem:[#allocation8 + $0x49] sm:$0x1f] %vm1561, %v1550
    %s1572 = sld [smem:[#allocation17]]
    %s1573 = sld [smem:[#allocation17 + $0x1]]
    %s1574 = sld [smem:[#allocation17 + $0x2]]
    %s1575 = sld [smem:[#allocation17 + $0x3]]
    %s1576 = sld [smem:[#allocation17 + $0x4]]
    %s1577 = sld [smem:[#allocation17 + $0x5]]
    %s1578 = sld [smem:[#allocation17 + $0x6]]
    %s1579 = sld [smem:[#allocation17 + $0x7]]
    %s1580 = sld [smem:[#allocation17 + $0x8]]
    %s1581 = sld [smem:[#allocation17 + $0x9]]
    %s1582 = sld [smem:[#allocation17 + $0xa]]
    %s1583 = sld [smem:[#allocation17 + $0xb]]
    %s1584 = sld [smem:[#allocation17 + $0xc]]
    %s1585 = sld [smem:[#allocation17 + $0xd]]
    %s1586 = sld [smem:[#allocation17 + $0xe]]
    %s1587 = sld [smem:[#allocation19]]
    %s1588 = sld [smem:[#allocation19 + $0x1]]
    %s1589 = sld [smem:[#allocation19 + $0x2]]
    %v1590 = vld [vmem:[#allocation8] sm:$0x7f]
    %v1591 = vld [vmem:[#allocation8 + $0x28] sm:$0x7f]
    %s1592 = scalar_lea.vmem [#allocation8], 8
    %v1593 = vld [vmem:[%s1592] sm:$0x7f]
    %v1594 = vld [vmem:[%s1592 + $0x28] sm:$0x7f]
    %s1595 = scalar_lea.vmem [#allocation8], 16
    %v1596 = vld [vmem:[%s1595] sm:$0x7f]
    %v1597 = vld [vmem:[%s1595 + $0x28] sm:$0x7f]
    %s1598 = scalar_lea.vmem [#allocation8], 24
    %v1599 = vld [vmem:[%s1598] sm:$0x7f]
    %v1600 = vld [vmem:[%s1598 + $0x28] sm:$0x7f]
    %s1601 = scalar_lea.vmem [#allocation8], 32
    %v1602 = vld [vmem:[%s1601] sm:$0x7f]
    %v1603 = vld [vmem:[%s1601 + $0x28] sm:$0x7f]
    %v1604 = vstv %s1572
    %v1605 = vmul.f32 %v1590, %v1604
    %v1606 = vmul.f32 %v1591, %v1604
    %v1607 = vstv %s1573
    %v1608 = vmul.f32 %v1593, %v1607
    %v1609 = vmul.f32 %v1594, %v1607
    %v1610 = vadd.f32 %v1605, %v1608
    %v1611 = vadd.f32 %v1606, %v1609
    %v1612 = vstv %s1574
    %v1613 = vmul.f32 %v1596, %v1612
    %v1614 = vmul.f32 %v1597, %v1612
    %v1615 = vadd.f32 %v1610, %v1613
    %v1616 = vadd.f32 %v1611, %v1614
    %v1617 = vstv %s1575
    %v1618 = vmul.f32 %v1599, %v1617
    %v1619 = vmul.f32 %v1600, %v1617
    %v1620 = vadd.f32 %v1615, %v1618
    %v1621 = vadd.f32 %v1616, %v1619
    %v1622 = vstv %s1576
    %v1623 = vmul.f32 %v1602, %v1622
    %v1624 = vmul.f32 %v1603, %v1622
    %v1625 = vadd.f32 %v1620, %v1623
    %v1626 = vadd.f32 %v1621, %v1624
    %v1627 = vstv %s1587
    %v1628 = vadd.f32 %v1625, %v1627
    %v1629 = vadd.f32 %v1626, %v1627
    %vm1630 = vcmp.gt.f32.partialorder %v1628, 0.0
    %vm1631 = vcmp.gt.f32.partialorder %v1629, 0.0
    %v1632 = vmul.f32 %v1628, -0.1
    %v1633 = vmul.f32 %v1629, -0.1
    %v1634 = vsel %vm1630, %v1628, %v1632
    %v1635 = vsel %vm1631, %v1629, %v1633
    %1636 = vst.msk [vmem:[%s7] sm:$0x7f] %vm808, %v1634
    %1637 = vst.msk [vmem:[%s7 + $0x18] sm:$0x7f] %vm808, %v1635
    %v1638 = vstv %s1577
    %v1639 = vmul.f32 %v1590, %v1638
    %v1640 = vmul.f32 %v1591, %v1638
    %v1641 = vstv %s1578
    %v1642 = vmul.f32 %v1593, %v1641
    %v1643 = vmul.f32 %v1594, %v1641
    %v1644 = vadd.f32 %v1639, %v1642
    %v1645 = vadd.f32 %v1640, %v1643
    %v1646 = vstv %s1579
    %v1647 = vmul.f32 %v1596, %v1646
    %v1648 = vmul.f32 %v1597, %v1646
    %v1649 = vadd.f32 %v1644, %v1647
    %v1650 = vadd.f32 %v1645, %v1648
    %v1651 = vstv %s1580
    %v1652 = vmul.f32 %v1599, %v1651
    %v1653 = vmul.f32 %v1600, %v1651
    %v1654 = vadd.f32 %v1649, %v1652
    %v1655 = vadd.f32 %v1650, %v1653
    %v1656 = vstv %s1581
    %v1657 = vmul.f32 %v1602, %v1656
    %v1658 = vmul.f32 %v1603, %v1656
    %v1659 = vadd.f32 %v1654, %v1657
    %v1660 = vadd.f32 %v1655, %v1658
    %v1661 = vstv %s1588
    %v1662 = vadd.f32 %v1659, %v1661
    %v1663 = vadd.f32 %v1660, %v1661
    %vm1664 = vcmp.gt.f32.partialorder %v1662, 0.0
    %vm1665 = vcmp.gt.f32.partialorder %v1663, 0.0
    %v1666 = vmul.f32 %v1662, -0.1
    %v1667 = vmul.f32 %v1663, -0.1
    %v1668 = vsel %vm1664, %v1662, %v1666
    %v1669 = vsel %vm1665, %v1663, %v1667
    %s1670 = scalar_lea.vmem %s7, 8
    %1671 = vst.msk [vmem:[%s1670] sm:$0x7f] %vm808, %v1668
    %1672 = vst.msk [vmem:[%s1670 + $0x18] sm:$0x7f] %vm808, %v1669
    %v1673 = vstv %s1582
    %v1674 = vmul.f32 %v1590, %v1673
    %v1675 = vmul.f32 %v1591, %v1673
    %v1676 = vstv %s1583
    %v1677 = vmul.f32 %v1593, %v1676
    %v1678 = vmul.f32 %v1594, %v1676
    %v1679 = vadd.f32 %v1674, %v1677
    %v1680 = vadd.f32 %v1675, %v1678
    %v1681 = vstv %s1584
    %v1682 = vmul.f32 %v1596, %v1681
    %v1683 = vmul.f32 %v1597, %v1681
    %v1684 = vadd.f32 %v1679, %v1682
    %v1685 = vadd.f32 %v1680, %v1683
    %v1686 = vstv %s1585
    %v1687 = vmul.f32 %v1599, %v1686
    %v1688 = vmul.f32 %v1600, %v1686
    %v1689 = vadd.f32 %v1684, %v1687
    %v1690 = vadd.f32 %v1685, %v1688
    %v1691 = vstv %s1586
    %v1692 = vmul.f32 %v1602, %v1691
    %v1693 = vmul.f32 %v1603, %v1691
    %v1694 = vadd.f32 %v1689, %v1692
    %v1695 = vadd.f32 %v1690, %v1693
    %v1696 = vstv %s1589
    %v1697 = vadd.f32 %v1694, %v1696
    %v1698 = vadd.f32 %v1695, %v1696
    %vm1699 = vcmp.gt.f32.partialorder %v1697, 0.0
    %vm1700 = vcmp.gt.f32.partialorder %v1698, 0.0
    %v1701 = vmul.f32 %v1697, -0.1
    %v1702 = vmul.f32 %v1698, -0.1
    %v1703 = vsel %vm1699, %v1697, %v1701
    %v1704 = vsel %vm1700, %v1698, %v1702
    %s1705 = scalar_lea.vmem %s7, 16
    %1706 = vst.msk [vmem:[%s1705] sm:$0x7f] %vm808, %v1703
    %1707 = vst.msk [vmem:[%s1705 + $0x18] sm:$0x7f] %vm808, %v1704
    // Predicated region
    $region54: #{model_forward.1} parent=1 // pred_check
      _
    $region55: #{model_forward.1} parent=1 // pred_check_branch
      %1709 = sbr.rel (0) target = $region57
    $region56: #{model_forward.1} parent=1 // pred_region
      _
    $region57: #{model_forward.1} parent=1 // pred_fallthru
      _
    // Predicated region
    $region58: #{model_forward.1} parent=1 // pred_check
      _
    $region59: #{model_forward.1} parent=1 // pred_check_branch
      %1711 = sbr.rel (0) target = $region61
    $region60: #{model_forward.1} parent=1 // pred_region
      _
    $region61: #{model_forward.1} parent=1 // pred_fallthru
      _
    %1712 = vsyncpa [#allocation11], 1
    %1713 = vsyncpa [#allocation12], 1
    %1714 = vsyncpa [#allocation15], 1
    %1715 = vsyncpa [#allocation18], 1

</llo_original>
